<compile_context>
chip_gen: v7x
topology: tpu7x:2x2x1
jax: 0.10.0
libtpu: 0.0.40
codegen_flags: <defaults>
</compile_context>

<pallas_src>
import functools

import jax
import jax.numpy as jnp
from jax.experimental import pallas as pl
from jax.experimental.pallas import tpu as pltpu


# ----------------------------------------------------------------------------
# Kernel
# ----------------------------------------------------------------------------
def _fused_head_kernel(comp_ref, prot_ref,
                       w1c_ref, w1p_ref, b1_ref,
                       w2_ref, b2_ref,
                       w3_ref, b3_ref,
                       out_ref,
                       comp_acc, prot_acc,
                       *, inv_lc, inv_lp):
    t = pl.program_id(1)

    @pl.when(t == 0)
    def _init():
        comp_acc[...] = jnp.zeros_like(comp_acc)
        prot_acc[...] = jnp.zeros_like(prot_acc)

    # Streamed partial sums over the current token chunk.  The f32 accumulate
    # is fused into the reduction (no materialized f32 copy of the bf16 chunk).
    comp_acc[...] += jnp.sum(comp_ref[...], axis=1, dtype=jnp.float32)
    prot_acc[...] += jnp.sum(prot_ref[...], axis=1, dtype=jnp.float32)

    @pl.when(t == pl.num_programs(1) - 1)
    def _finalize():
        # Means over the *true* token counts (zero-padded rows contribute 0),
        # cast to the (bf16) weight dtype for the MXU dots.
        comp = (comp_acc[...] * inv_lc).astype(w1c_ref.dtype)
        prot = (prot_acc[...] * inv_lp).astype(w1p_ref.dtype)

        # concat([comp, prot], 1) @ W1  ==  comp @ W1_chem + prot @ W1_prot
        h1 = (jnp.dot(comp, w1c_ref[...], preferred_element_type=jnp.float32)
              + jnp.dot(prot, w1p_ref[...], preferred_element_type=jnp.float32)
              + b1_ref[...])
        h1 = jnp.maximum(h1, 0.0)            # ReLU; Dropout(eval) == identity

        h2 = jnp.dot(h1.astype(w2_ref.dtype), w2_ref[...],
                     preferred_element_type=jnp.float32) + b2_ref[...]
        h2 = jnp.maximum(h2, 0.0)

        # Final N=1 layer on VPU/XLU (mul + lane reduce) instead of a
        # one-column MXU matmul; write the result lane-dense across 128 lanes.
        logit = jnp.sum(h2 * w3_ref[...], axis=-1, keepdims=True) + b3_ref[...]
        prob = jax.nn.sigmoid(logit)         # [bt, 1]
        out_ref[...] = jnp.broadcast_to(prob, out_ref.shape)


# ----------------------------------------------------------------------------
# Tiling / VMEM planning helpers
# ----------------------------------------------------------------------------
def _pick_batch_tile(B, batch_tile):
    """Multiple-of-8 batch tile, bounded by batch_tile, sized so that large
    batches give >= 2 batch tiles (keeps v7x's second TensorCore busy)."""
    if B <= 8:
        return B                              # full-extent block, no padding
    half = ((B + 1) // 2 + 7) // 8 * 8        # ~half the batch, rounded to 8
    return max(8, (min(batch_tile, half) // 8) * 8)


def _token_chunks(Lc, Lp, token_tile):
    """Shared token-step count; each sequence gets its own chunk length
    (multiple of 16 for bf16 sublane packing) and is zero-padded separately."""
    ts = max(1, pl.cdiv(max(Lc, Lp), max(16, token_tile)))

    def chunk(L):
        if ts == 1:
            return L                          # single full-extent block
        return max(16, pl.cdiv(pl.cdiv(L, ts), 16) * 16)

    return ts, chunk(Lc), chunk(Lp)


def _vmem_need_bytes(bt, tlc, tlp, Hc, Hp, n2h, nh, in_item, w_item):
    """Conservative VMEM estimate: double-buffered streams + (budgeted as
    double-buffered) weights/biases + double-buffered output + scratch."""
    stream = 2 * bt * (tlc * Hc + tlp * Hp) * in_item
    weights = 2 * ((Hc + Hp) * n2h + n2h * nh) * w_item
    biases = 2 * 4 * (n2h + 2 * nh + 1)
    out = 2 * bt * 128 * 4
    scratch = 4 * bt * (Hc + Hp)
    return stream + weights + biases + out + scratch


def _vmem_capacity_bytes(default=64 * 2**20):
    """Physical VMEM per core; fall back to the smallest (v7x) if unknown."""
    try:
        info = pltpu.get_tpu_info()
        cap = getattr(info, "vmem_capacity_bytes", None)
        if cap:
            return int(cap)
    except Exception:
        pass
    return default


def _pad_axis(x, axis, target):
    if x.shape[axis] == target:
        return x
    pad = [(0, 0)] * x.ndim
    pad[axis] = (0, target - x.shape[axis])
    return jnp.pad(x, pad)


# ----------------------------------------------------------------------------
# Host wrapper
# ----------------------------------------------------------------------------
def chembert_protbert_head(compound_hidden, protein_hidden, params, *,
                           token_tile=None, batch_tile=64,
                           single_buffer_weights=True):
    """compound_hidden: [B, Lc, Hc], protein_hidden: [B, Lp, Hp] -> [B] probs."""
    B, Lc, Hc = compound_hidden.shape
    _, Lp, Hp = protein_hidden.shape
    n2h = params["b1"].shape[-1]              # 2 * hidden_dim
    nh = params["b2"].shape[-1]               # hidden_dim

    phys = _vmem_capacity_bytes()
    cap = int(phys * 0.8)                     # ~51 MiB on v7x, ~102 MiB v5e/v6e

    # Pure HBM-streaming kernel: bigger per-step DMAs on big-VMEM chips.
    if token_tile is None:
        token_tile = 256 if phys >= 96 * 2**20 else 128

    in_item = compound_hidden.dtype.itemsize
    w_item = params["w2"].dtype.itemsize

    bt = _pick_batch_tile(B, batch_tile)
    while True:
        ts, tlc, tlp = _token_chunks(Lc, Lp, token_tile)
        need = _vmem_need_bytes(bt, tlc, tlp, Hc, Hp, n2h, nh, in_item, w_item)
        if need <= int(cap * 0.85) or token_tile <= 16:
            break
        token_tile //= 2
    while need > int(cap * 0.85) and bt > 8:
        bt = max(8, (bt // 2) // 8 * 8)
        need = _vmem_need_bytes(bt, tlc, tlp, Hc, Hp, n2h, nh, in_item, w_item)

    vmem_limit = int(min(max(cap, need + (8 << 20)), int(phys * 0.92)))

    # Zero-pad the token axes to steps*chunk (sum unchanged; means divide by
    # the true Lc/Lp) and the batch axis to a multiple of bt (sliced off).
    Bp = pl.cdiv(B, bt) * bt
    comp_in = _pad_axis(_pad_axis(compound_hidden, 1, ts * tlc), 0, Bp)
    prot_in = _pad_axis(_pad_axis(protein_hidden, 1, ts * tlp), 0, Bp)

    kernel = functools.partial(_fused_head_kernel,
                               inv_lc=1.0 / Lc, inv_lp=1.0 / Lp)
    const = lambda b, t: (0, 0)               # weights resident across chunks

    def _call(weight_mode):
        wkw = {} if weight_mode is None else {"pipeline_mode": weight_mode}
        in_specs = [
            pl.BlockSpec((bt, tlc, Hc), lambda b, t: (b, t, 0)),
            pl.BlockSpec((bt, tlp, Hp), lambda b, t: (b, t, 0)),
            pl.BlockSpec((Hc, n2h), const, **wkw),
            pl.BlockSpec((Hp, n2h), const, **wkw),
            pl.BlockSpec((1, n2h), const, **wkw),
            pl.BlockSpec((n2h, nh), const, **wkw),
            pl.BlockSpec((1, nh), const, **wkw),
            pl.BlockSpec((1, nh), const, **wkw),
            pl.BlockSpec((1, 1), const, **wkw),
        ]
        return pl.pallas_call(
            kernel,
            out_shape=jax.ShapeDtypeStruct((Bp, 128), jnp.float32),
            grid_spec=pltpu.PrefetchScalarGridSpec(
                num_scalar_prefetch=0,
                grid=(Bp // bt, ts),
                in_specs=in_specs,
                out_specs=pl.BlockSpec((bt, 128), lambda b, t: (b, 0)),
                scratch_shapes=[
                    pltpu.VMEM((bt, Hc), jnp.float32),
                    pltpu.VMEM((bt, Hp), jnp.float32),
                ],
            ),
            compiler_params=pltpu.CompilerParams(
                dimension_semantics=("parallel", "arbitrary"),
                vmem_limit_bytes=vmem_limit,
            ),
        )(comp_in, prot_in,
          params["w1_chem"], params["w1_prot"], params["b1"],
          params["w2"], params["b2"],
          params["w3"], params["b3"])

    weight_mode = (pl.Buffered(1)
                   if single_buffer_weights and hasattr(pl, "Buffered")
                   else None)
    if weight_mode is not None:
        try:
            out = _call(weight_mode)
        except Exception:
            out = _call(None)   # fallback: default-buffered constant weights
    else:
        out = _call(None)

    # Lane-broadcast output; column 0 holds the probability. torch.squeeze -> [B].
    return out[:B, 0]


# ----------------------------------------------------------------------------
# Parameters & reference
# ----------------------------------------------------------------------------
def init_params(key, chem_hidden, prot_hidden, hidden_dim):
    """Deterministic synthetic parameters.

    Weight matrices are stored [in, out] (transposed vs torch.nn.Linear.weight)
    and in bf16 (halves weight DMA / VMEM residency); biases and the tiny final
    layer stay f32 since they add directly into f32 accumulators.
    """
    ks = jax.random.split(key, 6)
    in_dim = chem_hidden + prot_hidden
    s1 = 1.0 / jnp.sqrt(in_dim)
    s2 = 1.0 / jnp.sqrt(2 * hidden_dim)
    s3 = 1.0 / jnp.sqrt(hidden_dim)
    w1 = jax.random.uniform(ks[0], (in_dim, 2 * hidden_dim), jnp.float32, -s1, s1)
    return {
        "w1_chem": w1[:chem_hidden].astype(jnp.bfloat16),
        "w1_prot": w1[chem_hidden:].astype(jnp.bfloat16),
        "b1": jax.random.uniform(ks[1], (1, 2 * hidden_dim), jnp.float32, -s1, s1),
        "w2": jax.random.uniform(ks[2], (2 * hidden_dim, hidden_dim), jnp.float32,
                                 -s2, s2).astype(jnp.bfloat16),
        "b2": jax.random.uniform(ks[3], (1, hidden_dim), jnp.float32, -s2, s2),
        # Final Linear(hidden_dim, 1) stored as a row [1, hidden_dim] for the
        # VPU multiply + lane-reduce path.
        "w3": jax.random.uniform(ks[4], (1, hidden_dim), jnp.float32, -s3, s3),
        "b3": jax.random.uniform(ks[5], (1, 1), jnp.float32, -s3, s3),
    }


def _reference(compound_hidden, protein_hidden, params):
    comp = jnp.mean(compound_hidden.astype(jnp.float32), axis=1)
    prot = jnp.mean(protein_hidden.astype(jnp.float32), axis=1)
    comp = comp.astype(params["w1_chem"].dtype)
    prot = prot.astype(params["w1_prot"].dtype)
    h1 = (jnp.dot(comp, params["w1_chem"], preferred_element_type=jnp.float32)
          + jnp.dot(prot, params["w1_prot"], preferred_element_type=jnp.float32)
          + params["b1"])
    h1 = jnp.maximum(h1, 0.0)
    h2 = jnp.dot(h1.astype(params["w2"].dtype), params["w2"],
                 preferred_element_type=jnp.float32) + params["b2"]
    h2 = jnp.maximum(h2, 0.0)
    logit = jnp.sum(h2 * params["w3"], axis=-1, keepdims=True) + params["b3"]
    return jnp.squeeze(jax.nn.sigmoid(logit), axis=-1)


if __name__ == "__main__":
    key = jax.random.PRNGKey(0)
    k_comp, k_prot, k_params = jax.random.split(key, 3)

    # Small synthetic shapes consistent with the module's forward():
    B = 2            # batch size
    Lc = 24          # compound tokens (not a chunk multiple -> exercises padding)
    Hc = 32          # chem_bert hidden size (config.chem_bert_hidden_siz)
    Lp = 40          # protein tokens (decoupled chunking from Lc)
    Hp = 48          # prot_bert hidden size (config.prot_bert_hidden_siz)
    hidden_dim = 16  # config.hidden_dim

    # Hidden states kept in bf16 in HBM; kernel accumulates in f32.
    compound_hidden = jax.random.normal(k_comp, (B, Lc, Hc), jnp.float32
                                        ).astype(jnp.bfloat16)
    protein_hidden = jax.random.normal(k_prot, (B, Lp, Hp), jnp.float32
                                       ).astype(jnp.bfloat16)
    params = init_params(k_params, Hc, Hp, hidden_dim)

    # token_tile=16 so the small demo exercises the multi-step streamed
    # reduction with decoupled, zero-padded token chunks (real shapes use the
    # VMEM-derived 128/256-token chunks).
    out = chembert_protbert_head(compound_hidden, protein_hidden, params,
                                 token_tile=16)
    out = jax.block_until_ready(out)

    ref = _reference(compound_hidden, protein_hidden, params)
    assert out.shape == (B,)
    assert jnp.allclose(out, ref, atol=2e-3, rtol=2e-3), (out, ref)
    print("KERNEL_OK")
</pallas_src>

<mosaic_0001>
module attributes {stable_mosaic.version = 11 : i64} {
  func.func @_fused_head_kernel(%arg0: i32, %arg1: i32, %arg2: memref<2x16x32xbf16, #tpu.memory_space<vmem>>, %arg3: memref<2x16x48xbf16, #tpu.memory_space<vmem>>, %arg4: memref<32x32xbf16, #tpu.memory_space<vmem>>, %arg5: memref<48x32xbf16, #tpu.memory_space<vmem>>, %arg6: memref<1x32xf32, #tpu.memory_space<vmem>>, %arg7: memref<32x16xbf16, #tpu.memory_space<vmem>>, %arg8: memref<1x16xf32, #tpu.memory_space<vmem>>, %arg9: memref<1x16xf32, #tpu.memory_space<vmem>>, %arg10: memref<1x1xf32, #tpu.memory_space<vmem>>, %arg11: memref<2x128xf32, #tpu.memory_space<vmem>>, %arg12: memref<2x32xf32, #tpu.memory_space<vmem>>, %arg13: memref<2x48xf32, #tpu.memory_space<vmem>>) attributes {dimension_semantics = [#tpu.dimension_semantics<parallel>, #tpu.dimension_semantics<arbitrary>], iteration_bounds = array<i64: 1, 3>, scalar_prefetch = 0 : i64, scratch_operands = 2 : i64, tpu.core_type = #tpu.core_type<tc>, window_params = [{transform_indices = @transform_0, window_bounds = array<i64: 2, 16, 32>}, {transform_indices = @transform_1, window_bounds = array<i64: 2, 16, 48>}, {pipeline_mode = #tpu.pipeline_mode<synchronous>, transform_indices = @transform_2, window_bounds = array<i64: 32, 32>}, {pipeline_mode = #tpu.pipeline_mode<synchronous>, transform_indices = @transform_3, window_bounds = array<i64: 48, 32>}, {pipeline_mode = #tpu.pipeline_mode<synchronous>, transform_indices = @transform_4, window_bounds = array<i64: 1, 32>}, {pipeline_mode = #tpu.pipeline_mode<synchronous>, transform_indices = @transform_5, window_bounds = array<i64: 32, 16>}, {pipeline_mode = #tpu.pipeline_mode<synchronous>, transform_indices = @transform_6, window_bounds = array<i64: 1, 16>}, {pipeline_mode = #tpu.pipeline_mode<synchronous>, transform_indices = @transform_7, window_bounds = array<i64: 1, 16>}, {pipeline_mode = #tpu.pipeline_mode<synchronous>, transform_indices = @transform_8, window_bounds = array<i64: 1, 1>}, {transform_indices = @transform_9, window_bounds = array<i64: 2, 128>}]} {
    %c0_i32 = arith.constant 0 : i32
    %0 = arith.cmpi eq, %arg1, %c0_i32 : i32
    %1 = arith.extui %0 : i1 to i32
    %c0_i32_0 = arith.constant 0 : i32
    %2 = arith.cmpi ne, %1, %c0_i32_0 : i32
    scf.if %2 {
      %cst_16 = arith.constant 0.000000e+00 : f32
      %18 = vector.broadcast %cst_16 : f32 to vector<2x32xf32>
      %c0_17 = arith.constant 0 : index
      %c0_18 = arith.constant 0 : index
      %19 = vector.load %arg12[%c0_17, %c0_18] : memref<2x32xf32, #tpu.memory_space<vmem>>, vector<2x32xf32>
      tpu.vector_store %arg12[%c0_17, %c0_18], %18 {strides = array<i32>} : memref<2x32xf32, #tpu.memory_space<vmem>>, vector<2x32xf32>,
      %cst_19 = arith.constant 0.000000e+00 : f32
      %20 = vector.broadcast %cst_19 : f32 to vector<2x48xf32>
      %c0_20 = arith.constant 0 : index
      %c0_21 = arith.constant 0 : index
      %21 = vector.load %arg13[%c0_20, %c0_21] : memref<2x48xf32, #tpu.memory_space<vmem>>, vector<2x48xf32>
      tpu.vector_store %arg13[%c0_20, %c0_21], %20 {strides = array<i32>} : memref<2x48xf32, #tpu.memory_space<vmem>>, vector<2x48xf32>,
    } else {
    }
    %c0 = arith.constant 0 : index
    %c0_1 = arith.constant 0 : index
    %3 = vector.load %arg12[%c0, %c0_1] : memref<2x32xf32, #tpu.memory_space<vmem>>, vector<2x32xf32>
    %c0_2 = arith.constant 0 : index
    %c0_3 = arith.constant 0 : index
    %c0_4 = arith.constant 0 : index
    %4 = vector.load %arg2[%c0_2, %c0_3, %c0_4] : memref<2x16x32xbf16, #tpu.memory_space<vmem>>, vector<2x16x32xbf16>
    %5 = arith.extf %4 : vector<2x16x32xbf16> to vector<2x16x32xf32>
    %cst = arith.constant dense<0.000000e+00> : vector<2x32xf32>
    %6 = vector.multi_reduction <add>, %5, %cst [1] : vector<2x16x32xf32> to vector<2x32xf32>
    %7 = arith.addf %3, %6 : vector<2x32xf32>
    %c0_5 = arith.constant 0 : index
    %c0_6 = arith.constant 0 : index
    %8 = vector.load %arg12[%c0_5, %c0_6] : memref<2x32xf32, #tpu.memory_space<vmem>>, vector<2x32xf32>
    tpu.vector_store %arg12[%c0_5, %c0_6], %7 {strides = array<i32>} : memref<2x32xf32, #tpu.memory_space<vmem>>, vector<2x32xf32>,
    %c0_7 = arith.constant 0 : index
    %c0_8 = arith.constant 0 : index
    %9 = vector.load %arg13[%c0_7, %c0_8] : memref<2x48xf32, #tpu.memory_space<vmem>>, vector<2x48xf32>
    %c0_9 = arith.constant 0 : index
    %c0_10 = arith.constant 0 : index
    %c0_11 = arith.constant 0 : index
    %10 = vector.load %arg3[%c0_9, %c0_10, %c0_11] : memref<2x16x48xbf16, #tpu.memory_space<vmem>>, vector<2x16x48xbf16>
    %11 = arith.extf %10 : vector<2x16x48xbf16> to vector<2x16x48xf32>
    %cst_12 = arith.constant dense<0.000000e+00> : vector<2x48xf32>
    %12 = vector.multi_reduction <add>, %11, %cst_12 [1] : vector<2x16x48xf32> to vector<2x48xf32>
    %13 = arith.addf %9, %12 : vector<2x48xf32>
    %c0_13 = arith.constant 0 : index
    %c0_14 = arith.constant 0 : index
    %14 = vector.load %arg13[%c0_13, %c0_14] : memref<2x48xf32, #tpu.memory_space<vmem>>, vector<2x48xf32>
    tpu.vector_store %arg13[%c0_13, %c0_14], %13 {strides = array<i32>} : memref<2x48xf32, #tpu.memory_space<vmem>>, vector<2x48xf32>,
    %c2_i32 = arith.constant 2 : i32
    %15 = arith.cmpi eq, %arg1, %c2_i32 : i32
    %16 = arith.extui %15 : i1 to i32
    %c0_i32_15 = arith.constant 0 : i32
    %17 = arith.cmpi ne, %16, %c0_i32_15 : i32
    scf.if %17 {
      %c0_16 = arith.constant 0 : index
      %c0_17 = arith.constant 0 : index
      %18 = vector.load %arg12[%c0_16, %c0_17] : memref<2x32xf32, #tpu.memory_space<vmem>>, vector<2x32xf32>
      %cst_18 = arith.constant 0.0416666679 : f32
      %19 = vector.broadcast %cst_18 : f32 to vector<2x32xf32>
      %20 = arith.mulf %18, %19 : vector<2x32xf32>
      %21 = arith.truncf %20 : vector<2x32xf32> to vector<2x32xbf16>
      %c0_19 = arith.constant 0 : index
      %c0_20 = arith.constant 0 : index
      %22 = vector.load %arg13[%c0_19, %c0_20] : memref<2x48xf32, #tpu.memory_space<vmem>>, vector<2x48xf32>
      %cst_21 = arith.constant 2.500000e-02 : f32
      %23 = vector.broadcast %cst_21 : f32 to vector<2x48xf32>
      %24 = arith.mulf %22, %23 : vector<2x48xf32>
      %25 = arith.truncf %24 : vector<2x48xf32> to vector<2x48xbf16>
      %c0_22 = arith.constant 0 : index
      %c0_23 = arith.constant 0 : index
      %26 = vector.load %arg4[%c0_22, %c0_23] : memref<32x32xbf16, #tpu.memory_space<vmem>>, vector<32x32xbf16>
      %cst_24 = arith.constant dense<0.000000e+00> : vector<2x32xf32>
      %27 = tpu.matmul %21, %26, %cst_24 {dimension_numbers = #tpu.dot_dimension_numbers<[1], [0], [0], [1], [0, 0, 1, 1], [], []>} : vector<2x32xbf16>, vector<32x32xbf16>, vector<2x32xf32> -> vector<2x32xf32>
      %c0_25 = arith.constant 0 : index
      %c0_26 = arith.constant 0 : index
      %28 = vector.load %arg5[%c0_25, %c0_26] : memref<48x32xbf16, #tpu.memory_space<vmem>>, vector<48x32xbf16>
      %cst_27 = arith.constant dense<0.000000e+00> : vector<2x32xf32>
      %29 = tpu.matmul %25, %28, %cst_27 {dimension_numbers = #tpu.dot_dimension_numbers<[1], [0], [0], [1], [0, 0, 1, 1], [], []>} : vector<2x48xbf16>, vector<48x32xbf16>, vector<2x32xf32> -> vector<2x32xf32>
      %30 = arith.addf %27, %29 : vector<2x32xf32>
      %c0_28 = arith.constant 0 : index
      %c0_29 = arith.constant 0 : index
      %31 = vector.load %arg6[%c0_28, %c0_29] : memref<1x32xf32, #tpu.memory_space<vmem>>, vector<1x32xf32>
      %32 = vector.broadcast %31 : vector<1x32xf32> to vector<2x32xf32>
      %33 = arith.addf %30, %32 : vector<2x32xf32>
      %cst_30 = arith.constant 0.000000e+00 : f32
      %34 = vector.broadcast %cst_30 : f32 to vector<2x32xf32>
      %35 = arith.maximumf %33, %34 : vector<2x32xf32>
      %36 = arith.truncf %35 : vector<2x32xf32> to vector<2x32xbf16>
      %c0_31 = arith.constant 0 : index
      %c0_32 = arith.constant 0 : index
      %37 = vector.load %arg7[%c0_31, %c0_32] : memref<32x16xbf16, #tpu.memory_space<vmem>>, vector<32x16xbf16>
      %cst_33 = arith.constant dense<0.000000e+00> : vector<2x16xf32>
      %38 = tpu.matmul %36, %37, %cst_33 {dimension_numbers = #tpu.dot_dimension_numbers<[1], [0], [0], [1], [0, 0, 1, 1], [], []>} : vector<2x32xbf16>, vector<32x16xbf16>, vector<2x16xf32> -> vector<2x16xf32>
      %c0_34 = arith.constant 0 : index
      %c0_35 = arith.constant 0 : index
      %39 = vector.load %arg8[%c0_34, %c0_35] : memref<1x16xf32, #tpu.memory_space<vmem>>, vector<1x16xf32>
      %40 = vector.broadcast %39 : vector<1x16xf32> to vector<2x16xf32>
      %41 = arith.addf %38, %40 : vector<2x16xf32>
      %cst_36 = arith.constant 0.000000e+00 : f32
      %42 = vector.broadcast %cst_36 : f32 to vector<2x16xf32>
      %43 = arith.maximumf %41, %42 : vector<2x16xf32>
      %c0_37 = arith.constant 0 : index
      %c0_38 = arith.constant 0 : index
      %44 = vector.load %arg9[%c0_37, %c0_38] : memref<1x16xf32, #tpu.memory_space<vmem>>, vector<1x16xf32>
      %45 = vector.broadcast %44 : vector<1x16xf32> to vector<2x16xf32>
      %46 = arith.mulf %43, %45 : vector<2x16xf32>
      %cst_39 = arith.constant dense<0.000000e+00> : vector<2xf32>
      %47 = vector.multi_reduction <add>, %46, %cst_39 [1] : vector<2x16xf32> to vector<2xf32>
      %48 = vector.shape_cast %47 : vector<2xf32> to vector<2x1xf32>
      %c0_40 = arith.constant 0 : index
      %c0_41 = arith.constant 0 : index
      %49 = vector.load %arg10[%c0_40, %c0_41] : memref<1x1xf32, #tpu.memory_space<vmem>>, vector<1x1xf32>
      %50 = vector.broadcast %49 : vector<1x1xf32> to vector<2x1xf32>
      %51 = arith.addf %48, %50 : vector<2x1xf32>
      %52 = arith.negf %51 : vector<2x1xf32>
      %53 = math.exp %52 : vector<2x1xf32>
      %cst_42 = arith.constant 1.000000e+00 : f32
      %54 = vector.broadcast %cst_42 : f32 to vector<2x1xf32>
      %55 = arith.addf %54, %53 : vector<2x1xf32>
      %56 = arith.divf %54, %55 : vector<2x1xf32>
      %57 = vector.shape_cast %56 : vector<2x1xf32> to vector<2x1xf32>
      %58 = vector.broadcast %57 : vector<2x1xf32> to vector<2x128xf32>
      %c0_43 = arith.constant 0 : index
      %c0_44 = arith.constant 0 : index
      %59 = vector.load %arg11[%c0_43, %c0_44] : memref<2x128xf32, #tpu.memory_space<vmem>>, vector<2x128xf32>
      tpu.vector_store %arg11[%c0_43, %c0_44], %58 {strides = array<i32>} : memref<2x128xf32, #tpu.memory_space<vmem>>, vector<2x128xf32>,
    } else {
    }
    return
  }
  func.func @transform_0(%arg0: i32, %arg1: i32) -> (i32, i32, i32) {
    %c0_i32 = arith.constant 0 : i32
    %c0_i32_0 = arith.constant 0 : i32
    return %arg0, %arg1, %c0_i32 : i32, i32, i32
  }
  func.func @transform_1(%arg0: i32, %arg1: i32) -> (i32, i32, i32) {
    %c0_i32 = arith.constant 0 : i32
    %c0_i32_0 = arith.constant 0 : i32
    return %arg0, %arg1, %c0_i32 : i32, i32, i32
  }
  func.func @transform_2(%arg0: i32, %arg1: i32) -> (i32, i32) {
    %c0_i32 = arith.constant 0 : i32
    %c0_i32_0 = arith.constant 0 : i32
    %c0_i32_1 = arith.constant 0 : i32
    return %c0_i32, %c0_i32_0 : i32, i32
  }
  func.func @transform_3(%arg0: i32, %arg1: i32) -> (i32, i32) {
    %c0_i32 = arith.constant 0 : i32
    %c0_i32_0 = arith.constant 0 : i32
    %c0_i32_1 = arith.constant 0 : i32
    return %c0_i32, %c0_i32_0 : i32, i32
  }
  func.func @transform_4(%arg0: i32, %arg1: i32) -> (i32, i32) {
    %c0_i32 = arith.constant 0 : i32
    %c0_i32_0 = arith.constant 0 : i32
    %c0_i32_1 = arith.constant 0 : i32
    return %c0_i32, %c0_i32_0 : i32, i32
  }
  func.func @transform_5(%arg0: i32, %arg1: i32) -> (i32, i32) {
    %c0_i32 = arith.constant 0 : i32
    %c0_i32_0 = arith.constant 0 : i32
    %c0_i32_1 = arith.constant 0 : i32
    return %c0_i32, %c0_i32_0 : i32, i32
  }
  func.func @transform_6(%arg0: i32, %arg1: i32) -> (i32, i32) {
    %c0_i32 = arith.constant 0 : i32
    %c0_i32_0 = arith.constant 0 : i32
    %c0_i32_1 = arith.constant 0 : i32
    return %c0_i32, %c0_i32_0 : i32, i32
  }
  func.func @transform_7(%arg0: i32, %arg1: i32) -> (i32, i32) {
    %c0_i32 = arith.constant 0 : i32
    %c0_i32_0 = arith.constant 0 : i32
    %c0_i32_1 = arith.constant 0 : i32
    return %c0_i32, %c0_i32_0 : i32, i32
  }
  func.func @transform_8(%arg0: i32, %arg1: i32) -> (i32, i32) {
    %c0_i32 = arith.constant 0 : i32
    %c0_i32_0 = arith.constant 0 : i32
    %c0_i32_1 = arith.constant 0 : i32
    return %c0_i32, %c0_i32_0 : i32, i32
  }
  func.func @transform_9(%arg0: i32, %arg1: i32) -> (i32, i32) {
    %c0_i32 = arith.constant 0 : i32
    %c0_i32_0 = arith.constant 0 : i32
    return %arg0, %c0_i32 : i32, i32
  }
}

module attributes {stable_mosaic.version = 11 : i64} {
  func.func @_fused_head_kernel(%arg0: i32, %arg1: i32, %arg2: memref<2x16x32xbf16, #tpu.memory_space<vmem>>, %arg3: memref<2x16x48xbf16, #tpu.memory_space<vmem>>, %arg4: memref<32x32xbf16, #tpu.memory_space<vmem>>, %arg5: memref<48x32xbf16, #tpu.memory_space<vmem>>, %arg6: memref<1x32xf32, #tpu.memory_space<vmem>>, %arg7: memref<32x16xbf16, #tpu.memory_space<vmem>>, %arg8: memref<1x16xf32, #tpu.memory_space<vmem>>, %arg9: memref<1x16xf32, #tpu.memory_space<vmem>>, %arg10: memref<1x1xf32, #tpu.memory_space<vmem>>, %arg11: memref<2x128xf32, #tpu.memory_space<vmem>>, %arg12: memref<2x32xf32, #tpu.memory_space<vmem>>, %arg13: memref<2x48xf32, #tpu.memory_space<vmem>>) attributes {dimension_semantics = [#tpu.dimension_semantics<parallel>, #tpu.dimension_semantics<arbitrary>], iteration_bounds = array<i64: 1, 3>, scalar_prefetch = 0 : i64, scratch_operands = 2 : i64, tpu.core_type = #tpu.core_type<tc>, window_params = [{transform_indices = @transform_0, window_bounds = array<i64: 2, 16, 32>}, {transform_indices = @transform_1, window_bounds = array<i64: 2, 16, 48>}, {pipeline_mode = #tpu.pipeline_mode<synchronous>, transform_indices = @transform_2, window_bounds = array<i64: 32, 32>}, {pipeline_mode = #tpu.pipeline_mode<synchronous>, transform_indices = @transform_3, window_bounds = array<i64: 48, 32>}, {pipeline_mode = #tpu.pipeline_mode<synchronous>, transform_indices = @transform_4, window_bounds = array<i64: 1, 32>}, {pipeline_mode = #tpu.pipeline_mode<synchronous>, transform_indices = @transform_5, window_bounds = array<i64: 32, 16>}, {pipeline_mode = #tpu.pipeline_mode<synchronous>, transform_indices = @transform_6, window_bounds = array<i64: 1, 16>}, {pipeline_mode = #tpu.pipeline_mode<synchronous>, transform_indices = @transform_7, window_bounds = array<i64: 1, 16>}, {pipeline_mode = #tpu.pipeline_mode<synchronous>, transform_indices = @transform_8, window_bounds = array<i64: 1, 1>}, {transform_indices = @transform_9, window_bounds = array<i64: 2, 128>}]} {
    %c0_i32 = arith.constant 0 : i32
    %0 = arith.cmpi eq, %arg1, %c0_i32 : i32
    %1 = arith.extui %0 : i1 to i32
    %c0_i32_0 = arith.constant 0 : i32
    %2 = arith.cmpi ne, %1, %c0_i32_0 : i32
    scf.if %2 {
      %cst_16 = arith.constant 0.000000e+00 : f32
      %18 = vector.broadcast %cst_16 : f32 to vector<2x32xf32>
      %c0_17 = arith.constant 0 : index
      %c0_18 = arith.constant 0 : index
      %19 = vector.load %arg12[%c0_17, %c0_18] : memref<2x32xf32, #tpu.memory_space<vmem>>, vector<2x32xf32>
      tpu.vector_store %arg12[%c0_17, %c0_18], %18 {strides = array<i32>} : memref<2x32xf32, #tpu.memory_space<vmem>>, vector<2x32xf32>,
      %cst_19 = arith.constant 0.000000e+00 : f32
      %20 = vector.broadcast %cst_19 : f32 to vector<2x48xf32>
      %c0_20 = arith.constant 0 : index
      %c0_21 = arith.constant 0 : index
      %21 = vector.load %arg13[%c0_20, %c0_21] : memref<2x48xf32, #tpu.memory_space<vmem>>, vector<2x48xf32>
      tpu.vector_store %arg13[%c0_20, %c0_21], %20 {strides = array<i32>} : memref<2x48xf32, #tpu.memory_space<vmem>>, vector<2x48xf32>,
    } else {
    }
    %c0 = arith.constant 0 : index
    %c0_1 = arith.constant 0 : index
    %3 = vector.load %arg12[%c0, %c0_1] : memref<2x32xf32, #tpu.memory_space<vmem>>, vector<2x32xf32>
    %c0_2 = arith.constant 0 : index
    %c0_3 = arith.constant 0 : index
    %c0_4 = arith.constant 0 : index
    %4 = vector.load %arg2[%c0_2, %c0_3, %c0_4] : memref<2x16x32xbf16, #tpu.memory_space<vmem>>, vector<2x16x32xbf16>
    %5 = arith.extf %4 : vector<2x16x32xbf16> to vector<2x16x32xf32>
    %cst = arith.constant dense<0.000000e+00> : vector<2x32xf32>
    %6 = vector.multi_reduction <add>, %5, %cst [1] : vector<2x16x32xf32> to vector<2x32xf32>
    %7 = arith.addf %3, %6 : vector<2x32xf32>
    %c0_5 = arith.constant 0 : index
    %c0_6 = arith.constant 0 : index
    %8 = vector.load %arg12[%c0_5, %c0_6] : memref<2x32xf32, #tpu.memory_space<vmem>>, vector<2x32xf32>
    tpu.vector_store %arg12[%c0_5, %c0_6], %7 {strides = array<i32>} : memref<2x32xf32, #tpu.memory_space<vmem>>, vector<2x32xf32>,
    %c0_7 = arith.constant 0 : index
    %c0_8 = arith.constant 0 : index
    %9 = vector.load %arg13[%c0_7, %c0_8] : memref<2x48xf32, #tpu.memory_space<vmem>>, vector<2x48xf32>
    %c0_9 = arith.constant 0 : index
    %c0_10 = arith.constant 0 : index
    %c0_11 = arith.constant 0 : index
    %10 = vector.load %arg3[%c0_9, %c0_10, %c0_11] : memref<2x16x48xbf16, #tpu.memory_space<vmem>>, vector<2x16x48xbf16>
    %11 = arith.extf %10 : vector<2x16x48xbf16> to vector<2x16x48xf32>
    %cst_12 = arith.constant dense<0.000000e+00> : vector<2x48xf32>
    %12 = vector.multi_reduction <add>, %11, %cst_12 [1] : vector<2x16x48xf32> to vector<2x48xf32>
    %13 = arith.addf %9, %12 : vector<2x48xf32>
    %c0_13 = arith.constant 0 : index
    %c0_14 = arith.constant 0 : index
    %14 = vector.load %arg13[%c0_13, %c0_14] : memref<2x48xf32, #tpu.memory_space<vmem>>, vector<2x48xf32>
    tpu.vector_store %arg13[%c0_13, %c0_14], %13 {strides = array<i32>} : memref<2x48xf32, #tpu.memory_space<vmem>>, vector<2x48xf32>,
    %c2_i32 = arith.constant 2 : i32
    %15 = arith.cmpi eq, %arg1, %c2_i32 : i32
    %16 = arith.extui %15 : i1 to i32
    %c0_i32_15 = arith.constant 0 : i32
    %17 = arith.cmpi ne, %16, %c0_i32_15 : i32
    scf.if %17 {
      %c0_16 = arith.constant 0 : index
      %c0_17 = arith.constant 0 : index
      %18 = vector.load %arg12[%c0_16, %c0_17] : memref<2x32xf32, #tpu.memory_space<vmem>>, vector<2x32xf32>
      %cst_18 = arith.constant 0.0416666679 : f32
      %19 = vector.broadcast %cst_18 : f32 to vector<2x32xf32>
      %20 = arith.mulf %18, %19 : vector<2x32xf32>
      %21 = arith.truncf %20 : vector<2x32xf32> to vector<2x32xbf16>
      %c0_19 = arith.constant 0 : index
      %c0_20 = arith.constant 0 : index
      %22 = vector.load %arg13[%c0_19, %c0_20] : memref<2x48xf32, #tpu.memory_space<vmem>>, vector<2x48xf32>
      %cst_21 = arith.constant 2.500000e-02 : f32
      %23 = vector.broadcast %cst_21 : f32 to vector<2x48xf32>
      %24 = arith.mulf %22, %23 : vector<2x48xf32>
      %25 = arith.truncf %24 : vector<2x48xf32> to vector<2x48xbf16>
      %c0_22 = arith.constant 0 : index
      %c0_23 = arith.constant 0 : index
      %26 = vector.load %arg4[%c0_22, %c0_23] : memref<32x32xbf16, #tpu.memory_space<vmem>>, vector<32x32xbf16>
      %cst_24 = arith.constant dense<0.000000e+00> : vector<2x32xf32>
      %27 = tpu.matmul %21, %26, %cst_24 {dimension_numbers = #tpu.dot_dimension_numbers<[1], [0], [0], [1], [0, 0, 1, 1], [], []>} : vector<2x32xbf16>, vector<32x32xbf16>, vector<2x32xf32> -> vector<2x32xf32>
      %c0_25 = arith.constant 0 : index
      %c0_26 = arith.constant 0 : index
      %28 = vector.load %arg5[%c0_25, %c0_26] : memref<48x32xbf16, #tpu.memory_space<vmem>>, vector<48x32xbf16>
      %cst_27 = arith.constant dense<0.000000e+00> : vector<2x32xf32>
      %29 = tpu.matmul %25, %28, %cst_27 {dimension_numbers = #tpu.dot_dimension_numbers<[1], [0], [0], [1], [0, 0, 1, 1], [], []>} : vector<2x48xbf16>, vector<48x32xbf16>, vector<2x32xf32> -> vector<2x32xf32>
      %30 = arith.addf %27, %29 : vector<2x32xf32>
      %c0_28 = arith.constant 0 : index
      %c0_29 = arith.constant 0 : index
      %31 = vector.load %arg6[%c0_28, %c0_29] : memref<1x32xf32, #tpu.memory_space<vmem>>, vector<1x32xf32>
      %32 = vector.broadcast %31 : vector<1x32xf32> to vector<2x32xf32>
      %33 = arith.addf %30, %32 : vector<2x32xf32>
      %cst_30 = arith.constant 0.000000e+00 : f32
      %34 = vector.broadcast %cst_30 : f32 to vector<2x32xf32>
      %35 = arith.maximumf %33, %34 : vector<2x32xf32>
      %36 = arith.truncf %35 : vector<2x32xf32> to vector<2x32xbf16>
      %c0_31 = arith.constant 0 : index
      %c0_32 = arith.constant 0 : index
      %37 = vector.load %arg7[%c0_31, %c0_32] : memref<32x16xbf16, #tpu.memory_space<vmem>>, vector<32x16xbf16>
      %cst_33 = arith.constant dense<0.000000e+00> : vector<2x16xf32>
      %38 = tpu.matmul %36, %37, %cst_33 {dimension_numbers = #tpu.dot_dimension_numbers<[1], [0], [0], [1], [0, 0, 1, 1], [], []>} : vector<2x32xbf16>, vector<32x16xbf16>, vector<2x16xf32> -> vector<2x16xf32>
      %c0_34 = arith.constant 0 : index
      %c0_35 = arith.constant 0 : index
      %39 = vector.load %arg8[%c0_34, %c0_35] : memref<1x16xf32, #tpu.memory_space<vmem>>, vector<1x16xf32>
      %40 = vector.broadcast %39 : vector<1x16xf32> to vector<2x16xf32>
      %41 = arith.addf %38, %40 : vector<2x16xf32>
      %cst_36 = arith.constant 0.000000e+00 : f32
      %42 = vector.broadcast %cst_36 : f32 to vector<2x16xf32>
      %43 = arith.maximumf %41, %42 : vector<2x16xf32>
      %c0_37 = arith.constant 0 : index
      %c0_38 = arith.constant 0 : index
      %44 = vector.load %arg9[%c0_37, %c0_38] : memref<1x16xf32, #tpu.memory_space<vmem>>, vector<1x16xf32>
      %45 = vector.broadcast %44 : vector<1x16xf32> to vector<2x16xf32>
      %46 = arith.mulf %43, %45 : vector<2x16xf32>
      %cst_39 = arith.constant dense<0.000000e+00> : vector<2xf32>
      %47 = vector.multi_reduction <add>, %46, %cst_39 [1] : vector<2x16xf32> to vector<2xf32>
      %48 = vector.shape_cast %47 : vector<2xf32> to vector<2x1xf32>
      %c0_40 = arith.constant 0 : index
      %c0_41 = arith.constant 0 : index
      %49 = vector.load %arg10[%c0_40, %c0_41] : memref<1x1xf32, #tpu.memory_space<vmem>>, vector<1x1xf32>
      %50 = vector.broadcast %49 : vector<1x1xf32> to vector<2x1xf32>
      %51 = arith.addf %48, %50 : vector<2x1xf32>
      %52 = arith.negf %51 : vector<2x1xf32>
      %53 = math.exp %52 : vector<2x1xf32>
      %cst_42 = arith.constant 1.000000e+00 : f32
      %54 = vector.broadcast %cst_42 : f32 to vector<2x1xf32>
      %55 = arith.addf %54, %53 : vector<2x1xf32>
      %56 = arith.divf %54, %55 : vector<2x1xf32>
      %57 = vector.shape_cast %56 : vector<2x1xf32> to vector<2x1xf32>
      %58 = vector.broadcast %57 : vector<2x1xf32> to vector<2x128xf32>
      %c0_43 = arith.constant 0 : index
      %c0_44 = arith.constant 0 : index
      %59 = vector.load %arg11[%c0_43, %c0_44] : memref<2x128xf32, #tpu.memory_space<vmem>>, vector<2x128xf32>
      tpu.vector_store %arg11[%c0_43, %c0_44], %58 {strides = array<i32>} : memref<2x128xf32, #tpu.memory_space<vmem>>, vector<2x128xf32>,
    } else {
    }
    return
  }
  func.func @transform_0(%arg0: i32, %arg1: i32) -> (i32, i32, i32) {
    %c0_i32 = arith.constant 0 : i32
    %c0_i32_0 = arith.constant 0 : i32
    return %arg0, %arg1, %c0_i32 : i32, i32, i32
  }
  func.func @transform_1(%arg0: i32, %arg1: i32) -> (i32, i32, i32) {
    %c0_i32 = arith.constant 0 : i32
    %c0_i32_0 = arith.constant 0 : i32
    return %arg0, %arg1, %c0_i32 : i32, i32, i32
  }
  func.func @transform_2(%arg0: i32, %arg1: i32) -> (i32, i32) {
    %c0_i32 = arith.constant 0 : i32
    %c0_i32_0 = arith.constant 0 : i32
    %c0_i32_1 = arith.constant 0 : i32
    return %c0_i32, %c0_i32_0 : i32, i32
  }
  func.func @transform_3(%arg0: i32, %arg1: i32) -> (i32, i32) {
    %c0_i32 = arith.constant 0 : i32
    %c0_i32_0 = arith.constant 0 : i32
    %c0_i32_1 = arith.constant 0 : i32
    return %c0_i32, %c0_i32_0 : i32, i32
  }
  func.func @transform_4(%arg0: i32, %arg1: i32) -> (i32, i32) {
    %c0_i32 = arith.constant 0 : i32
    %c0_i32_0 = arith.constant 0 : i32
    %c0_i32_1 = arith.constant 0 : i32
    return %c0_i32, %c0_i32_0 : i32, i32
  }
  func.func @transform_5(%arg0: i32, %arg1: i32) -> (i32, i32) {
    %c0_i32 = arith.constant 0 : i32
    %c0_i32_0 = arith.constant 0 : i32
    %c0_i32_1 = arith.constant 0 : i32
    return %c0_i32, %c0_i32_0 : i32, i32
  }
  func.func @transform_6(%arg0: i32, %arg1: i32) -> (i32, i32) {
    %c0_i32 = arith.constant 0 : i32
    %c0_i32_0 = arith.constant 0 : i32
    %c0_i32_1 = arith.constant 0 : i32
    return %c0_i32, %c0_i32_0 : i32, i32
  }
  func.func @transform_7(%arg0: i32, %arg1: i32) -> (i32, i32) {
    %c0_i32 = arith.constant 0 : i32
    %c0_i32_0 = arith.constant 0 : i32
    %c0_i32_1 = arith.constant 0 : i32
    return %c0_i32, %c0_i32_0 : i32, i32
  }
  func.func @transform_8(%arg0: i32, %arg1: i32) -> (i32, i32) {
    %c0_i32 = arith.constant 0 : i32
    %c0_i32_0 = arith.constant 0 : i32
    %c0_i32_1 = arith.constant 0 : i32
    return %c0_i32, %c0_i32_0 : i32, i32
  }
  func.func @transform_9(%arg0: i32, %arg1: i32) -> (i32, i32) {
    %c0_i32 = arith.constant 0 : i32
    %c0_i32_0 = arith.constant 0 : i32
    return %arg0, %c0_i32 : i32, i32
  }
}

</mosaic_0001>

<llo_original>
// kernel: tpu_custom_call.1
$region0: #{tpu_custom_call.1}
  #allocation0 [shape = 'u32[]', space=smem, size = 0x4, offset = 0x4, fixed_abs, tag = 'smem constant byte address 0x4 - core index']
  #allocation1 [shape = 'u32[144,128]{1,0:T(1,128)}', space=vmem, size = 0x12000, scoped, tag = 'internal scratch']
  #allocation2 [shape = 'f32[2,32]{1,0:T(2,128)}', space=vmem, size = 0x400, scoped, tag = 'scratch operand']
  #allocation3 [shape = 'f32[2,48]{1,0:T(2,128)}', space=vmem, size = 0x400, scoped, tag = 'scratch operand']
  #allocation4 [shape = 'f32[1,1]{1,0:T(1,128)S(1)}', space=vmem, size = 0x200, scoped, tag = 'scoped memory for tpu_custom_call.1']
  %s0 = inlined_call_operand.vmem [shape: bf16[2,48,32], index: 0, kind: input, shape index: {}]
  %s1 = inlined_call_operand.vmem [shape: bf16[2,48,48], index: 1, kind: input, shape index: {}]
  %s2 = inlined_call_operand.vmem [shape: bf16[32,32], index: 2, kind: input, shape index: {}]
  %s3 = inlined_call_operand.vmem [shape: bf16[48,32], index: 3, kind: input, shape index: {}]
  %s4 = inlined_call_operand.vmem [shape: f32[1,32], index: 4, kind: input, shape index: {}]
  %s5 = inlined_call_operand.vmem [shape: bf16[32,16], index: 5, kind: input, shape index: {}]
  %s6 = inlined_call_operand.vmem [shape: f32[1,16], index: 6, kind: input, shape index: {}]
  %s7 = inlined_call_operand.vmem [shape: f32[1,16], index: 7, kind: input, shape index: {}]
  %s8 = inlined_call_operand.<no memory space> [shape: f32[1,1], index: 8, kind: input, shape index: {}]
  %s9 = inlined_call_operand.hbm [shape: f32[2,128], index: 9, kind: output, shape index: {}]
  %s10 = sld [smem:[#allocation0]]
  $region159: #{tpu_custom_call.1} parent=0
    _
  %s12 = ssub.s32 1, %s10
  %s13 = scalar_select 0, %s12, %s10
  %v14 = vstv %s8
  %15 = vst [vmem:[#allocation4] sm:$0x1] %v14
  $region1: #{tpu_custom_call.1} parent=0
    #allocation5 [shape = 'u8[16384]{0}', space=vmem, size = 0x4000, scoped, tag = 'input window, operand 0']
    #allocation6 [shape = 'u8[16384]{0}', space=vmem, size = 0x4000, scoped, tag = 'input window, operand 1']
    #allocation7 [shape = 'u8[1024]{0}', space=vmem, size = 0x400, scoped, tag = 'output window, operand 0, single buffered']
    #allocation8 [shape = 's32[2]{0}', space=sflag, size = 0x8, scoped, tag = 'scoped memory for tpu_custom_call.1']
    %16 = vsyncpa [#allocation8], 0
    loop: start=0, step=1, limit=5
    $region2: #{tpu_custom_call.1} parent=1 // loop_pre_header
      _
    $region3: #{tpu_custom_call.1} parent=1 // loop_header
      %s18 = sphi 0, %s22
      %p19 = scmp.ge.s32.totalorder %s18, 5
      %s25 = sphi 0, %s37
      %s26 = sphi 0, %s33
      %s27 = sphi 0, %s25
      %s28 = sphi 0, %s26
      %s29 = sphi 0, %s27
      %s30 = sphi 0, %s28
      %s42 = sphi 0, %s44
      %s45 = sphi 0, %s42
      %s46 = sphi 0, %s45
      %s62 = sphi 0, %s46
      %s70 = sphi 0, %s72
      %s73 = sphi 0, %s70
      %s74 = sphi 0, %s73
      %s90 = sphi 0, %s74
      %s94 = sphi 0, %s94
      %s96 = sphi 0, %s94
      %s97 = sphi 0, %s96
      %s111 = sphi 0, %s97
      %s115 = sphi 0, %s115
      %s117 = sphi 0, %s115
      %s118 = sphi 0, %s117
      %s132 = sphi 0, %s118
      %s136 = sphi 0, %s136
      %s138 = sphi 0, %s136
      %s139 = sphi 0, %s138
      %s153 = sphi 0, %s139
      %s157 = sphi 0, %s157
      %s159 = sphi 0, %s157
      %s160 = sphi 0, %s159
      %s174 = sphi 0, %s160
      %s178 = sphi 0, %s178
      %s180 = sphi 0, %s178
      %s181 = sphi 0, %s180
      %s195 = sphi 0, %s181
      %s199 = sphi 0, %s199
      %s201 = sphi 0, %s199
      %s202 = sphi 0, %s201
      %s216 = sphi 0, %s202
      %s220 = sphi 0, %s220
      %s222 = sphi 0, %s220
      %s223 = sphi 0, %s222
      %s237 = sphi 0, %s223
      %s243 = sphi 0, %s245
      %s246 = sphi 0, %s243
      %s247 = sphi 0, %s246
      %s263 = sphi 0, %s247
    $region4: #{tpu_custom_call.1} parent=1 // loop_header_branch
      %21 = sbr.rel (%p19) target = $region8
    $region5: #{tpu_custom_call.1} parent=1 // loop_body
      %s23 = ssub.s32 %s18, 1
      %s24 = ssub.s32 %s18, 2
      %s31 = sadd.s32 1, %s26
      %p32 = scmp.ge.s32.totalorder %s31, 3
      %s33 = scalar_select %p32, 0, %s31
      %s34 = sadd.s32 1, %s25
      %s35 = scalar_select %p32, %s34, %s25
      %p36 = scmp.ge.s32.totalorder %s35, 1
      %s37 = scalar_select %p36, 0, %s35
      %s38 = ssub.s32 %s25, %s37
      %s39 = ssub.s32 %s26, %s33
      %s40 = sor.u32 %s38, %s39
      %p41 = scmp.eq.s32.totalorder %s40, 0
      %s43 = sadd.s32 %s42, 1
      %s44 = scalar_select %p41, %s42, %s43
      %p47 = pneg %p41
      %p48 = scmp.eq.s32.totalorder %s18, 2
      %p49 = por %p47, %p48
      %p50 = scmp.ne.s32.totalorder %s42, %s45
      %p51 = scmp.eq.s32.totalorder %s18, 0
      %p52 = por %p50, %p51
      %p53 = scmp.ne.s32.totalorder %s42, %s45
      %p54 = scmp.eq.s32.totalorder %s23, 2
      %p55 = por %p53, %p54
      %p56 = scmp.ne.s32.totalorder %s45, %s46
      %p57 = scmp.eq.s32.totalorder %s23, 0
      %p58 = por %p56, %p57
      %p59 = scmp.ne.s32.totalorder %s45, %s46
      %p60 = scmp.eq.s32.totalorder %s24, 2
      %p61 = por %p59, %p60
      %p63 = scmp.ne.s32.totalorder %s46, %s62
      %p64 = scmp.eq.s32.totalorder %s24, 0
      %p65 = por %p63, %p64
      %s66 = ssub.s32 %s25, %s37
      %s67 = ssub.s32 %s26, %s33
      %s68 = sor.u32 %s66, %s67
      %p69 = scmp.eq.s32.totalorder %s68, 0
      %s71 = sadd.s32 %s70, 1
      %s72 = scalar_select %p69, %s70, %s71
      %p75 = pneg %p69
      %p76 = scmp.eq.s32.totalorder %s18, 2
      %p77 = por %p75, %p76
      %p78 = scmp.ne.s32.totalorder %s70, %s73
      %p79 = scmp.eq.s32.totalorder %s18, 0
      %p80 = por %p78, %p79
      %p81 = scmp.ne.s32.totalorder %s70, %s73
      %p82 = scmp.eq.s32.totalorder %s23, 2
      %p83 = por %p81, %p82
      %p84 = scmp.ne.s32.totalorder %s73, %s74
      %p85 = scmp.eq.s32.totalorder %s23, 0
      %p86 = por %p84, %p85
      %p87 = scmp.ne.s32.totalorder %s73, %s74
      %p88 = scmp.eq.s32.totalorder %s24, 2
      %p89 = por %p87, %p88
      %p91 = scmp.ne.s32.totalorder %s74, %s90
      %p92 = scmp.eq.s32.totalorder %s24, 0
      %p93 = por %p91, %p92
      %s95 = sadd.s32 %s94, 1
      %p98 = scmp.eq.s32.totalorder %s18, 2
      %p99 = scmp.ne.s32.totalorder %s94, %s96
      %p100 = scmp.eq.s32.totalorder %s18, 0
      %p101 = por %p99, %p100
      %p102 = scmp.ne.s32.totalorder %s94, %s96
      %p103 = scmp.eq.s32.totalorder %s23, 2
      %p104 = por %p102, %p103
      %p105 = scmp.ne.s32.totalorder %s96, %s97
      %p106 = scmp.eq.s32.totalorder %s23, 0
      %p107 = por %p105, %p106
      %p108 = scmp.ne.s32.totalorder %s96, %s97
      %p109 = scmp.eq.s32.totalorder %s24, 2
      %p110 = por %p108, %p109
      %p112 = scmp.ne.s32.totalorder %s97, %s111
      %p113 = scmp.eq.s32.totalorder %s24, 0
      %p114 = por %p112, %p113
      %s116 = sadd.s32 %s115, 1
      %p119 = scmp.eq.s32.totalorder %s18, 2
      %p120 = scmp.ne.s32.totalorder %s115, %s117
      %p121 = scmp.eq.s32.totalorder %s18, 0
      %p122 = por %p120, %p121
      %p123 = scmp.ne.s32.totalorder %s115, %s117
      %p124 = scmp.eq.s32.totalorder %s23, 2
      %p125 = por %p123, %p124
      %p126 = scmp.ne.s32.totalorder %s117, %s118
      %p127 = scmp.eq.s32.totalorder %s23, 0
      %p128 = por %p126, %p127
      %p129 = scmp.ne.s32.totalorder %s117, %s118
      %p130 = scmp.eq.s32.totalorder %s24, 2
      %p131 = por %p129, %p130
      %p133 = scmp.ne.s32.totalorder %s118, %s132
      %p134 = scmp.eq.s32.totalorder %s24, 0
      %p135 = por %p133, %p134
      %s137 = sadd.s32 %s136, 1
      %p140 = scmp.eq.s32.totalorder %s18, 2
      %p141 = scmp.ne.s32.totalorder %s136, %s138
      %p142 = scmp.eq.s32.totalorder %s18, 0
      %p143 = por %p141, %p142
      %p144 = scmp.ne.s32.totalorder %s136, %s138
      %p145 = scmp.eq.s32.totalorder %s23, 2
      %p146 = por %p144, %p145
      %p147 = scmp.ne.s32.totalorder %s138, %s139
      %p148 = scmp.eq.s32.totalorder %s23, 0
      %p149 = por %p147, %p148
      %p150 = scmp.ne.s32.totalorder %s138, %s139
      %p151 = scmp.eq.s32.totalorder %s24, 2
      %p152 = por %p150, %p151
      %p154 = scmp.ne.s32.totalorder %s139, %s153
      %p155 = scmp.eq.s32.totalorder %s24, 0
      %p156 = por %p154, %p155
      %s158 = sadd.s32 %s157, 1
      %p161 = scmp.eq.s32.totalorder %s18, 2
      %p162 = scmp.ne.s32.totalorder %s157, %s159
      %p163 = scmp.eq.s32.totalorder %s18, 0
      %p164 = por %p162, %p163
      %p165 = scmp.ne.s32.totalorder %s157, %s159
      %p166 = scmp.eq.s32.totalorder %s23, 2
      %p167 = por %p165, %p166
      %p168 = scmp.ne.s32.totalorder %s159, %s160
      %p169 = scmp.eq.s32.totalorder %s23, 0
      %p170 = por %p168, %p169
      %p171 = scmp.ne.s32.totalorder %s159, %s160
      %p172 = scmp.eq.s32.totalorder %s24, 2
      %p173 = por %p171, %p172
      %p175 = scmp.ne.s32.totalorder %s160, %s174
      %p176 = scmp.eq.s32.totalorder %s24, 0
      %p177 = por %p175, %p176
      %s179 = sadd.s32 %s178, 1
      %p182 = scmp.eq.s32.totalorder %s18, 2
      %p183 = scmp.ne.s32.totalorder %s178, %s180
      %p184 = scmp.eq.s32.totalorder %s18, 0
      %p185 = por %p183, %p184
      %p186 = scmp.ne.s32.totalorder %s178, %s180
      %p187 = scmp.eq.s32.totalorder %s23, 2
      %p188 = por %p186, %p187
      %p189 = scmp.ne.s32.totalorder %s180, %s181
      %p190 = scmp.eq.s32.totalorder %s23, 0
      %p191 = por %p189, %p190
      %p192 = scmp.ne.s32.totalorder %s180, %s181
      %p193 = scmp.eq.s32.totalorder %s24, 2
      %p194 = por %p192, %p193
      %p196 = scmp.ne.s32.totalorder %s181, %s195
      %p197 = scmp.eq.s32.totalorder %s24, 0
      %p198 = por %p196, %p197
      %s200 = sadd.s32 %s199, 1
      %p203 = scmp.eq.s32.totalorder %s18, 2
      %p204 = scmp.ne.s32.totalorder %s199, %s201
      %p205 = scmp.eq.s32.totalorder %s18, 0
      %p206 = por %p204, %p205
      %p207 = scmp.ne.s32.totalorder %s199, %s201
      %p208 = scmp.eq.s32.totalorder %s23, 2
      %p209 = por %p207, %p208
      %p210 = scmp.ne.s32.totalorder %s201, %s202
      %p211 = scmp.eq.s32.totalorder %s23, 0
      %p212 = por %p210, %p211
      %p213 = scmp.ne.s32.totalorder %s201, %s202
      %p214 = scmp.eq.s32.totalorder %s24, 2
      %p215 = por %p213, %p214
      %p217 = scmp.ne.s32.totalorder %s202, %s216
      %p218 = scmp.eq.s32.totalorder %s24, 0
      %p219 = por %p217, %p218
      %s221 = sadd.s32 %s220, 1
      %p224 = scmp.eq.s32.totalorder %s18, 2
      %p225 = scmp.ne.s32.totalorder %s220, %s222
      %p226 = scmp.eq.s32.totalorder %s18, 0
      %p227 = por %p225, %p226
      %p228 = scmp.ne.s32.totalorder %s220, %s222
      %p229 = scmp.eq.s32.totalorder %s23, 2
      %p230 = por %p228, %p229
      %p231 = scmp.ne.s32.totalorder %s222, %s223
      %p232 = scmp.eq.s32.totalorder %s23, 0
      %p233 = por %p231, %p232
      %p234 = scmp.ne.s32.totalorder %s222, %s223
      %p235 = scmp.eq.s32.totalorder %s24, 2
      %p236 = por %p234, %p235
      %p238 = scmp.ne.s32.totalorder %s223, %s237
      %p239 = scmp.eq.s32.totalorder %s24, 0
      %p240 = por %p238, %p239
      %s241 = ssub.s32 %s25, %s37
      %p242 = scmp.eq.s32.totalorder %s241, 0
      %s244 = sadd.s32 %s243, 1
      %s245 = scalar_select %p242, %s243, %s244
      %p248 = pneg %p242
      %p249 = scmp.eq.s32.totalorder %s18, 2
      %p250 = por %p248, %p249
      %p251 = scmp.ne.s32.totalorder %s243, %s246
      %p252 = scmp.eq.s32.totalorder %s18, 0
      %p253 = por %p251, %p252
      %p254 = scmp.ne.s32.totalorder %s243, %s246
      %p255 = scmp.eq.s32.totalorder %s23, 2
      %p256 = por %p254, %p255
      %p257 = scmp.ne.s32.totalorder %s246, %s247
      %p258 = scmp.eq.s32.totalorder %s23, 0
      %p259 = por %p257, %p258
      %p260 = scmp.ne.s32.totalorder %s246, %s247
      %p261 = scmp.eq.s32.totalorder %s24, 2
      %p262 = por %p260, %p261
      %p264 = scmp.ne.s32.totalorder %s247, %s263
      %p265 = scmp.eq.s32.totalorder %s24, 0
      %p266 = por %p264, %p265
      %p267 = scmp.le.s32.totalorder 1, %s18
      %p268 = scmp.lt.s32.totalorder %s18, 4
      %p269 = pnand %p267, %p268
      %p270 = pneg %p269
      // Predicated region
      $region9: #{tpu_custom_call.1} parent=5 // pred_check
        _
      $region10: #{tpu_custom_call.1} parent=5 // pred_check_branch
        %272 = sbr.rel (%p269) target = $region12
      $region11: #{tpu_custom_call.1} parent=5 // pred_region
        %s273 = ssub.s32 %s18, 1
        // Predicated region
        $region13: #{tpu_custom_call.1} parent=11 // pred_check
          %p274 = pneg %p107
        $region14: #{tpu_custom_call.1} parent=11 // pred_check_branch
          %276 = sbr.rel (%p274) target = $region16
        $region15: #{tpu_custom_call.1} parent=11 // pred_region
          _
        $region16: #{tpu_custom_call.1} parent=11 // pred_fallthru
          _
        // Predicated region
        $region17: #{tpu_custom_call.1} parent=11 // pred_check
          %p277 = pneg %p128
        $region18: #{tpu_custom_call.1} parent=11 // pred_check_branch
          %279 = sbr.rel (%p277) target = $region20
        $region19: #{tpu_custom_call.1} parent=11 // pred_region
          _
        $region20: #{tpu_custom_call.1} parent=11 // pred_fallthru
          _
        // Predicated region
        $region21: #{tpu_custom_call.1} parent=11 // pred_check
          %p280 = pneg %p149
        $region22: #{tpu_custom_call.1} parent=11 // pred_check_branch
          %282 = sbr.rel (%p280) target = $region24
        $region23: #{tpu_custom_call.1} parent=11 // pred_region
          _
        $region24: #{tpu_custom_call.1} parent=11 // pred_fallthru
          _
        // Predicated region
        $region25: #{tpu_custom_call.1} parent=11 // pred_check
          %p283 = pneg %p170
        $region26: #{tpu_custom_call.1} parent=11 // pred_check_branch
          %285 = sbr.rel (%p283) target = $region28
        $region27: #{tpu_custom_call.1} parent=11 // pred_region
          _
        $region28: #{tpu_custom_call.1} parent=11 // pred_fallthru
          _
        // Predicated region
        $region29: #{tpu_custom_call.1} parent=11 // pred_check
          %p286 = pneg %p191
        $region30: #{tpu_custom_call.1} parent=11 // pred_check_branch
          %288 = sbr.rel (%p286) target = $region32
        $region31: #{tpu_custom_call.1} parent=11 // pred_region
          _
        $region32: #{tpu_custom_call.1} parent=11 // pred_fallthru
          _
        // Predicated region
        $region33: #{tpu_custom_call.1} parent=11 // pred_check
          %p289 = pneg %p212
        $region34: #{tpu_custom_call.1} parent=11 // pred_check_branch
          %291 = sbr.rel (%p289) target = $region36
        $region35: #{tpu_custom_call.1} parent=11 // pred_region
          _
        $region36: #{tpu_custom_call.1} parent=11 // pred_fallthru
          _
        // Predicated region
        $region37: #{tpu_custom_call.1} parent=11 // pred_check
          %p292 = pneg %p233
        $region38: #{tpu_custom_call.1} parent=11 // pred_check_branch
          %294 = sbr.rel (%p292) target = $region40
        $region39: #{tpu_custom_call.1} parent=11 // pred_region
          _
        $region40: #{tpu_custom_call.1} parent=11 // pred_fallthru
          _
      $region12: #{tpu_custom_call.1} parent=5 // pred_fallthru
        _
      %p295 = scmp.lt.s32.totalorder %s18, 3
      // Predicated region
      $region41: #{tpu_custom_call.1} parent=5 // pred_check
        %p296 = pneg %p295
      $region42: #{tpu_custom_call.1} parent=5 // pred_check_branch
        %298 = sbr.rel (%p296) target = $region44
      $region43: #{tpu_custom_call.1} parent=5 // pred_region
        // Predicated region
        $region45: #{tpu_custom_call.1} parent=43 // pred_check
          %p299 = pneg %p52
        $region46: #{tpu_custom_call.1} parent=43 // pred_check_branch
          %301 = sbr.rel (%p299) target = $region48
        $region47: #{tpu_custom_call.1} parent=43 // pred_region
          %s302 = sand.u32 %s42, 1
          %s303 = sand.u32 %s42, 1
          %s304 = smul.addr %s303, 16
          %s305 = scalar_lea.vmem [#allocation5], %s304
          %s306 = smul.u32 2, %s25
          %s307 = smul.u32 2, %s26
          %s308 = smul.addr %s306, 6
          %s309 = sadd.s32 %s307, %s308
          %s310 = smul.addr %s309, 4
          %s311 = scalar_lea.vmem %s0, %s310
          // Predicated region
          $region49: #{tpu_custom_call.1} parent=47 // pred_check
            _
          $region50: #{tpu_custom_call.1} parent=47 // pred_check_branch
            %313 = sbr.rel (0) target = $region52
          $region51: #{tpu_custom_call.1} parent=47 // pred_region
            // Predicated region
            $region53: #{tpu_custom_call.1} parent=51 // pred_check
              _
            $region54: #{tpu_custom_call.1} parent=51 // pred_check_branch
              %315 = sbr.rel target = $region56
            $region55: #{tpu_custom_call.1} parent=51 // pred_region
              // Predicated region
              $region68: #{tpu_custom_call.1} parent=55 // pred_check
                _
              $region69: #{tpu_custom_call.1} parent=55 // pred_check_branch
                %336 = sbr.rel (0) target = $region71
              $region70: #{tpu_custom_call.1} parent=55 // pred_region
                loop: start=0, step=1, limit=1
                $region72: #{tpu_custom_call.1} parent=70 // loop_pre_header
                  _
                $region73: #{tpu_custom_call.1} parent=70 // loop_header
                  %s338 = sphi 0, %s342
                  %p339 = scmp.ge.s32.totalorder %s338, 1
                  %s343 = sphi %s311, %s311
                  %s344 = sphi %s305, %s305
                $region74: #{tpu_custom_call.1} parent=70 // loop_header_branch
                  %341 = sbr.rel (%p339) target = $region78
                $region75: #{tpu_custom_call.1} parent=70 // loop_body
                  _
                $region76: #{tpu_custom_call.1} parent=70 // loop_footer
                  %s342 = sadd.s32 1, %s338
                $region77: #{tpu_custom_call.1} parent=70 // loop_footer_branch
                  %337 = sbr.rel target = $region73
                $region78: #{tpu_custom_call.1} parent=70 // loop_exit
                  _
                loop: start=0, step=1, limit=1
                $region79: #{tpu_custom_call.1} parent=70 // loop_pre_header
                  _
                $region80: #{tpu_custom_call.1} parent=70 // loop_header
                  %s347 = sphi 0, %s351
                  %p348 = scmp.ge.s32.totalorder %s347, 1
                  %s352 = sphi %s311, %s311
                  %s353 = sphi %s305, %s305
                $region81: #{tpu_custom_call.1} parent=70 // loop_header_branch
                  %350 = sbr.rel (%p348) target = $region85
                $region82: #{tpu_custom_call.1} parent=70 // loop_body
                  %v354 = vld [vmem:[%s352] sm:$0xf]
                  %355 = vst [vmem:[%s353] sm:$0xf] %v354
                  %v356 = vld [vmem:[%s352 + $0x4] sm:$0xf]
                  %357 = vst [vmem:[%s353 + $0x4] sm:$0xf] %v356
                  %v358 = vld [vmem:[%s352 + $0x18] sm:$0xf]
                  %359 = vst [vmem:[%s353 + $0x8] sm:$0xf] %v358
                  %v360 = vld [vmem:[%s352 + $0x1c] sm:$0xf]
                  %361 = vst [vmem:[%s353 + $0xc] sm:$0xf] %v360
                $region83: #{tpu_custom_call.1} parent=70 // loop_footer
                  %s351 = sadd.s32 1, %s347
                $region84: #{tpu_custom_call.1} parent=70 // loop_footer_branch
                  %346 = sbr.rel target = $region80
                $region85: #{tpu_custom_call.1} parent=70 // loop_exit
                  _
              $region71: #{tpu_custom_call.1} parent=55 // pred_fallthru
                _
            $region56: #{tpu_custom_call.1} parent=51 // pred_fallthru
              _
            // Predicated region
            $region57: #{tpu_custom_call.1} parent=51 // pred_check
              _
            $region58: #{tpu_custom_call.1} parent=51 // pred_check_branch
              %317 = sbr.rel (0) target = $region60
            $region59: #{tpu_custom_call.1} parent=51 // pred_region
              loop: start=0, step=1, limit=1
              $region61: #{tpu_custom_call.1} parent=59 // loop_pre_header
                _
              $region62: #{tpu_custom_call.1} parent=59 // loop_header
                %s320 = sphi 0, %s324
                %p321 = scmp.ge.s32.totalorder %s320, 1
                %s325 = sphi %s311, %s311
                %s326 = sphi %s305, %s305
              $region63: #{tpu_custom_call.1} parent=59 // loop_header_branch
                %323 = sbr.rel (%p321) target = $region67
              $region64: #{tpu_custom_call.1} parent=59 // loop_body
                %v327 = vld [vmem:[%s325] sm:$0xf]
                %328 = vst [vmem:[%s326] sm:$0xf] %v327
                %v329 = vld [vmem:[%s325 + $0x4] sm:$0xf]
                %330 = vst [vmem:[%s326 + $0x4] sm:$0xf] %v329
                %v331 = vld [vmem:[%s325 + $0x18] sm:$0xf]
                %332 = vst [vmem:[%s326 + $0x8] sm:$0xf] %v331
                %v333 = vld [vmem:[%s325 + $0x1c] sm:$0xf]
                %334 = vst [vmem:[%s326 + $0xc] sm:$0xf] %v333
              $region65: #{tpu_custom_call.1} parent=59 // loop_footer
                %s324 = sadd.s32 1, %s320
              $region66: #{tpu_custom_call.1} parent=59 // loop_footer_branch
                %319 = sbr.rel target = $region62
              $region67: #{tpu_custom_call.1} parent=59 // loop_exit
                _
            $region60: #{tpu_custom_call.1} parent=51 // pred_fallthru
              _
          $region52: #{tpu_custom_call.1} parent=47 // pred_fallthru
            _
          %362 = vnop
        $region48: #{tpu_custom_call.1} parent=43 // pred_fallthru
          _
        // Predicated region
        $region86: #{tpu_custom_call.1} parent=43 // pred_check
          %p363 = pneg %p80
        $region87: #{tpu_custom_call.1} parent=43 // pred_check_branch
          %365 = sbr.rel (%p363) target = $region89
        $region88: #{tpu_custom_call.1} parent=43 // pred_region
          %s366 = sand.u32 %s70, 1
          %s367 = sand.u32 %s70, 1
          %s368 = smul.addr %s367, 16
          %s369 = scalar_lea.vmem [#allocation6], %s368
          %s370 = smul.u32 2, %s25
          %s371 = smul.u32 2, %s26
          %s372 = smul.addr %s370, 6
          %s373 = sadd.s32 %s371, %s372
          %s374 = smul.addr %s373, 4
          %s375 = scalar_lea.vmem %s1, %s374
          // Predicated region
          $region90: #{tpu_custom_call.1} parent=88 // pred_check
            _
          $region91: #{tpu_custom_call.1} parent=88 // pred_check_branch
            %377 = sbr.rel (0) target = $region93
          $region92: #{tpu_custom_call.1} parent=88 // pred_region
            // Predicated region
            $region94: #{tpu_custom_call.1} parent=92 // pred_check
              _
            $region95: #{tpu_custom_call.1} parent=92 // pred_check_branch
              %379 = sbr.rel target = $region97
            $region96: #{tpu_custom_call.1} parent=92 // pred_region
              // Predicated region
              $region109: #{tpu_custom_call.1} parent=96 // pred_check
                _
              $region110: #{tpu_custom_call.1} parent=96 // pred_check_branch
                %400 = sbr.rel (0) target = $region112
              $region111: #{tpu_custom_call.1} parent=96 // pred_region
                loop: start=0, step=1, limit=1
                $region113: #{tpu_custom_call.1} parent=111 // loop_pre_header
                  _
                $region114: #{tpu_custom_call.1} parent=111 // loop_header
                  %s402 = sphi 0, %s406
                  %p403 = scmp.ge.s32.totalorder %s402, 1
                  %s407 = sphi %s375, %s375
                  %s408 = sphi %s369, %s369
                $region115: #{tpu_custom_call.1} parent=111 // loop_header_branch
                  %405 = sbr.rel (%p403) target = $region119
                $region116: #{tpu_custom_call.1} parent=111 // loop_body
                  _
                $region117: #{tpu_custom_call.1} parent=111 // loop_footer
                  %s406 = sadd.s32 1, %s402
                $region118: #{tpu_custom_call.1} parent=111 // loop_footer_branch
                  %401 = sbr.rel target = $region114
                $region119: #{tpu_custom_call.1} parent=111 // loop_exit
                  _
                loop: start=0, step=1, limit=1
                $region120: #{tpu_custom_call.1} parent=111 // loop_pre_header
                  _
                $region121: #{tpu_custom_call.1} parent=111 // loop_header
                  %s411 = sphi 0, %s415
                  %p412 = scmp.ge.s32.totalorder %s411, 1
                  %s416 = sphi %s375, %s375
                  %s417 = sphi %s369, %s369
                $region122: #{tpu_custom_call.1} parent=111 // loop_header_branch
                  %414 = sbr.rel (%p412) target = $region126
                $region123: #{tpu_custom_call.1} parent=111 // loop_body
                  %v418 = vld [vmem:[%s416] sm:$0xf]
                  %419 = vst [vmem:[%s417] sm:$0xf] %v418
                  %v420 = vld [vmem:[%s416 + $0x4] sm:$0xf]
                  %421 = vst [vmem:[%s417 + $0x4] sm:$0xf] %v420
                  %v422 = vld [vmem:[%s416 + $0x18] sm:$0xf]
                  %423 = vst [vmem:[%s417 + $0x8] sm:$0xf] %v422
                  %v424 = vld [vmem:[%s416 + $0x1c] sm:$0xf]
                  %425 = vst [vmem:[%s417 + $0xc] sm:$0xf] %v424
                $region124: #{tpu_custom_call.1} parent=111 // loop_footer
                  %s415 = sadd.s32 1, %s411
                $region125: #{tpu_custom_call.1} parent=111 // loop_footer_branch
                  %410 = sbr.rel target = $region121
                $region126: #{tpu_custom_call.1} parent=111 // loop_exit
                  _
              $region112: #{tpu_custom_call.1} parent=96 // pred_fallthru
                _
            $region97: #{tpu_custom_call.1} parent=92 // pred_fallthru
              _
            // Predicated region
            $region98: #{tpu_custom_call.1} parent=92 // pred_check
              _
            $region99: #{tpu_custom_call.1} parent=92 // pred_check_branch
              %381 = sbr.rel (0) target = $region101
            $region100: #{tpu_custom_call.1} parent=92 // pred_region
              loop: start=0, step=1, limit=1
              $region102: #{tpu_custom_call.1} parent=100 // loop_pre_header
                _
              $region103: #{tpu_custom_call.1} parent=100 // loop_header
                %s384 = sphi 0, %s388
                %p385 = scmp.ge.s32.totalorder %s384, 1
                %s389 = sphi %s375, %s375
                %s390 = sphi %s369, %s369
              $region104: #{tpu_custom_call.1} parent=100 // loop_header_branch
                %387 = sbr.rel (%p385) target = $region108
              $region105: #{tpu_custom_call.1} parent=100 // loop_body
                %v391 = vld [vmem:[%s389] sm:$0xf]
                %392 = vst [vmem:[%s390] sm:$0xf] %v391
                %v393 = vld [vmem:[%s389 + $0x4] sm:$0xf]
                %394 = vst [vmem:[%s390 + $0x4] sm:$0xf] %v393
                %v395 = vld [vmem:[%s389 + $0x18] sm:$0xf]
                %396 = vst [vmem:[%s390 + $0x8] sm:$0xf] %v395
                %v397 = vld [vmem:[%s389 + $0x1c] sm:$0xf]
                %398 = vst [vmem:[%s390 + $0xc] sm:$0xf] %v397
              $region106: #{tpu_custom_call.1} parent=100 // loop_footer
                %s388 = sadd.s32 1, %s384
              $region107: #{tpu_custom_call.1} parent=100 // loop_footer_branch
                %383 = sbr.rel target = $region103
              $region108: #{tpu_custom_call.1} parent=100 // loop_exit
                _
            $region101: #{tpu_custom_call.1} parent=92 // pred_fallthru
              _
          $region93: #{tpu_custom_call.1} parent=88 // pred_fallthru
            _
          %426 = vnop
        $region89: #{tpu_custom_call.1} parent=43 // pred_fallthru
          _
      $region44: #{tpu_custom_call.1} parent=5 // pred_fallthru
        _
      %p427 = scmp.le.s32.totalorder 1, %s18
      %p428 = scmp.lt.s32.totalorder %s18, 4
      %p429 = pnand %p427, %p428
      %p430 = pneg %p429
      // Predicated region
      $region127: #{tpu_custom_call.1} parent=5 // pred_check
        _
      $region128: #{tpu_custom_call.1} parent=5 // pred_check_branch
        %432 = sbr.rel (%p429) target = $region130
      $region129: #{tpu_custom_call.1} parent=5 // pred_region
        %s433 = ssub.s32 %s18, 1
        %s434 = sand.u32 %s45, 1
        %s435 = sand.u32 %s45, 1
        %s436 = smul.addr %s435, 16
        %s437 = scalar_lea.vmem [#allocation5], %s436
        // Predicated region
        $region131: #{tpu_custom_call.1} parent=129 // pred_check
          %p438 = pneg %p58
        $region132: #{tpu_custom_call.1} parent=129 // pred_check_branch
          %440 = sbr.rel (%p438) target = $region134
        $region133: #{tpu_custom_call.1} parent=129 // pred_region
          _
        $region134: #{tpu_custom_call.1} parent=129 // pred_fallthru
          _
        %s441 = sand.u32 %s73, 1
        %s442 = sand.u32 %s73, 1
        %s443 = smul.addr %s442, 16
        %s444 = scalar_lea.vmem [#allocation6], %s443
        // Predicated region
        $region135: #{tpu_custom_call.1} parent=129 // pred_check
          %p445 = pneg %p86
        $region136: #{tpu_custom_call.1} parent=129 // pred_check_branch
          %447 = sbr.rel (%p445) target = $region138
        $region137: #{tpu_custom_call.1} parent=129 // pred_region
          _
        $region138: #{tpu_custom_call.1} parent=129 // pred_fallthru
          _
        %s448 = sand.u32 %s45, 1
        %s449 = sand.u32 %s45, 1
        %s450 = smul.addr %s449, 16
        %s451 = scalar_lea.vmem [#allocation5], %s450
        %p452 = pneg %p58
        %p453 = pneg %p55
        %s454 = sand.u32 %s73, 1
        %s455 = sand.u32 %s73, 1
        %s456 = smul.addr %s455, 16
        %s457 = scalar_lea.vmem [#allocation6], %s456
        %p458 = pneg %p86
        %p459 = pneg %p83
        %p460 = pneg %p107
        %p461 = pneg %p104
        %p462 = pneg %p128
        %p463 = pneg %p125
        %p464 = pneg %p149
        %p465 = pneg %p146
        %p466 = pneg %p170
        %p467 = pneg %p167
        %p468 = pneg %p191
        %p469 = pneg %p188
        %p470 = pneg %p212
        %p471 = pneg %p209
        %p472 = pneg %p233
        %p473 = pneg %p230
        %p474 = pneg %p259
        %p475 = pneg %p256
        %s476 = smul.u32 2, %s27
        %s477 = smul.u32 2, %s28
        %s478 = smul.u32 2, %s27
        %s479 = smul.u32 2, %s28
        %p481 = scmp.eq.s32.totalorder %s28, 0
        // Predicated region
        $region139: #{tpu_custom_call.1} parent=129 // pred_check
          %p482 = pneg %p481
        $region140: #{tpu_custom_call.1} parent=129 // pred_check_branch
          %484 = sbr.rel (%p482) target = $region142
        $region141: #{tpu_custom_call.1} parent=129 // pred_region
          %vm485 = vcmask 254976
          %486 = vst.msk [vmem:[#allocation2] sm:$0x3] %vm485, 0.0
          %vm487 = vcmask 386048
          %488 = vst.msk [vmem:[#allocation3] sm:$0x3] %vm487, 0.0
        $region142: #{tpu_custom_call.1} parent=129 // pred_fallthru
          _
        %v489 = vld [vmem:[#allocation2] sm:$0x3]
        %v490 = vld [vmem:[%s437] sm:$0xf]
        %v491 = vld [vmem:[%s437 + $0x4] sm:$0xf]
        %v492 = vld [vmem:[%s437 + $0x8] sm:$0xf]
        %v493 = vld [vmem:[%s437 + $0xc] sm:$0xf]
        %v494 = vunpack.c.l.bf16 %v490
        %v495 = vunpack.c.l.bf16 %v491
        %v496 = vunpack.c.l.bf16 %v492
        %v497 = vunpack.c.l.bf16 %v493
        %vm498 = vcmask 261120
        %v499 = vsel %vm498, %v494, 0.0
        %v500 = vsel %vm498, %v495, 0.0
        %v501 = vadd.f32 %v499, %v500
        %v502 = vrot.slane %v501, 4
        %v503 = vadd.f32 %v501, %v502
        %v504 = vrot.slane %v503, 2
        %v505 = vadd.f32 %v503, %v504
        %v506 = vrot.slane %v505, 1
        %v507 = vadd.f32 %v505, %v506
        %v508 = vsel %vm498, %v496, 0.0
        %v509 = vsel %vm498, %v497, 0.0
        %v510 = vadd.f32 %v508, %v509
        %v511 = vrot.slane %v510, 4
        %v512 = vadd.f32 %v510, %v511
        %v513 = vrot.slane %v512, 2
        %v514 = vadd.f32 %v512, %v513
        %v515 = vrot.slane %v514, 1
        %v516 = vadd.f32 %v514, %v515
        %vm519 = vcmask 1041409
        %v520 = vsel %vm519, %v516, %v507
        %v522 = vadd.f32 %v489, %v520
        %vm523 = vcmask 254976
        %524 = vst.msk [vmem:[#allocation2] sm:$0x3] %vm523, %v522
        %v525 = vld [vmem:[#allocation3] sm:$0x3]
        %v526 = vld [vmem:[%s444] sm:$0xf]
        %v527 = vld [vmem:[%s444 + $0x4] sm:$0xf]
        %v528 = vld [vmem:[%s444 + $0x8] sm:$0xf]
        %v529 = vld [vmem:[%s444 + $0xc] sm:$0xf]
        %v530 = vunpack.c.l.bf16 %v526
        %v531 = vunpack.c.l.bf16 %v527
        %v532 = vunpack.c.l.bf16 %v528
        %v533 = vunpack.c.l.bf16 %v529
        %vm534 = vcmask 392192
        %v535 = vsel %vm534, %v530, 0.0
        %v536 = vsel %vm534, %v531, 0.0
        %v537 = vadd.f32 %v535, %v536
        %v538 = vrot.slane %v537, 4
        %v539 = vadd.f32 %v537, %v538
        %v540 = vrot.slane %v539, 2
        %v541 = vadd.f32 %v539, %v540
        %v542 = vrot.slane %v541, 1
        %v543 = vadd.f32 %v541, %v542
        %v544 = vsel %vm534, %v532, 0.0
        %v545 = vsel %vm534, %v533, 0.0
        %v546 = vadd.f32 %v544, %v545
        %v547 = vrot.slane %v546, 4
        %v548 = vadd.f32 %v546, %v547
        %v549 = vrot.slane %v548, 2
        %v550 = vadd.f32 %v548, %v549
        %v551 = vrot.slane %v550, 1
        %v552 = vadd.f32 %v550, %v551
        %v555 = vsel %vm519, %v552, %v543
        %v557 = vadd.f32 %v525, %v555
        %vm558 = vcmask 386048
        %559 = vst.msk [vmem:[#allocation3] sm:$0x3] %vm558, %v557
        %p560 = scmp.eq.s32.totalorder %s28, 2
        // Predicated region
        $region143: #{tpu_custom_call.1} parent=129 // pred_check
          %p561 = pneg %p560
        $region144: #{tpu_custom_call.1} parent=129 // pred_check_branch
          %563 = sbr.rel (%p561) target = $region146
        $region145: #{tpu_custom_call.1} parent=129 // pred_region
          %v564 = vld [vmem:[#allocation2] sm:$0x3]
          %v565 = vmul.f32 %v564, 0.041666668
          %v566 = vpack.c.bf16 %v565, %v565
          %v567 = vld [vmem:[#allocation3] sm:$0x3]
          %v568 = vmul.f32 %v567, 0.025
          %v569 = vpack.c.bf16 %v568, %v568
          %v570 = vld [vmem:[%s2] sm:$0xf]
          %v571 = vld [vmem:[%s2 + $0x4] sm:$0xf]
          %v572 = vld [vmem:[%s2 + $0x8] sm:$0xf]
          %v573 = vld [vmem:[%s2 + $0xc] sm:$0xf]
          %v574 = vld [vmem:[%s3] sm:$0xf]
          %v575 = vld [vmem:[%s3 + $0x4] sm:$0xf]
          %v576 = vld [vmem:[%s3 + $0x8] sm:$0xf]
          %v577 = vld [vmem:[%s3 + $0xc] sm:$0xf]
          %v578 = vld [vmem:[%s3 + $0x10] sm:$0xf]
          %v579 = vld [vmem:[%s3 + $0x14] sm:$0xf]
          %v586 = vunpack.c.l.b16 %v574
          %v587 = vunpack.c.l.b16 %v575
          %v588 = vunpack.c.l.b16 %v576
          %v589 = vunpack.c.l.b16 %v577
          %v590 = vunpack.c.l.b16 %v578
          %v591 = vunpack.c.l.b16 %v579
          %v592 = vpack.c.b16 %v587, %v586
          %v593 = vpack.c.b16 %v589, %v588
          %v594 = vpack.c.b16 %v591, %v590
          %v599 = vsel %vm534, %v569, 0
          %601 = vmatprep.subr.bf16.mxu0 0
          %602 = vmatpush1.bf16.msra.mxu0 %v592
          %603 = vmatprep.subr.bf16.mxu0 0
          %604 = vmatpush1.bf16.msra.mxu0 %v593
          %605 = vmatprep.subr.bf16.mxu0 0
          %606 = vmatpush1.bf16.msra.mxu0 %v594
          %607 = vmatprep.subr.bf16.mxu0 0
          %608 = vmatpush1.bf16.msra.mxu0 0
          %609 = vmatprep.subr.bf16.mxu0 0
          %610 = vmatpush1.bf16.msra.mxu0 0
          %611 = vmatprep.subr.bf16.mxu0 0
          %612 = vmatpush1.bf16.msra.mxu0 0
          %613 = vmatprep.subr.bf16.mxu0 0
          %614 = vmatpush1.bf16.msra.mxu0 0
          %615 = vmatprep.subr.bf16.mxu0 0
          %616 = vmatpush1.bf16.msra.mxu0 0
          %617 = vmatprep.subr.bf16.mxu0 0
          %618 = vmatpush1.bf16.msra.mxu0 0
          %619 = vmatprep.subr.bf16.mxu0 0
          %620 = vmatpush1.bf16.msra.mxu0 0
          %621 = vmatprep.subr.bf16.mxu0 0
          %622 = vmatpush1.bf16.msra.mxu0 0
          %623 = vmatprep.subr.bf16.mxu0 0
          %624 = vmatpush1.bf16.msra.mxu0 0
          %625 = vmatprep.subr.bf16.mxu0 0
          %626 = vmatpush1.bf16.msra.mxu0 0
          %627 = vmatprep.subr.bf16.mxu0 0
          %628 = vmatpush1.bf16.msra.mxu0 0
          %629 = vmatprep.subr.bf16.mxu0 0
          %630 = vmatpush1.bf16.msra.mxu0 0
          %631 = vmatprep.subr.bf16.mxu0 0
          %632 = vmatpush1.bf16.msra.mxu0 0
          %633 = vmatprep.mubr.bf16.mxu0 0
          %634 = vmatmul.mubr.bf16.gmra.mrb[0].mxu0 %v599
          %v635 = vpop.f32.mrb[0].mxu0
          %v636 = vadd.f32 0.0, %v635
          %v637 = vpop.f32.mrb[0].mxu0
          %v638 = vpop.f32.mrb[0].mxu0
          %v639 = vpop.f32.mrb[0].mxu0
          %640 = vdwg.mxu0
          %v645 = vunpack.c.l.b16 %v570
          %v646 = vunpack.c.l.b16 %v571
          %v647 = vunpack.c.l.b16 %v572
          %v648 = vunpack.c.l.b16 %v573
          %v649 = vpack.c.b16 %v646, %v645
          %v650 = vpack.c.b16 %v648, %v647
          %v654 = vsel %vm498, %v566, 0
          %656 = vmatprep.subr.bf16.mxu0 0
          %657 = vmatpush1.bf16.msra.mxu0 %v649
          %658 = vmatprep.subr.bf16.mxu0 0
          %659 = vmatpush1.bf16.msra.mxu0 %v650
          %660 = vmatprep.subr.bf16.mxu0 0
          %661 = vmatpush1.bf16.msra.mxu0 0
          %662 = vmatprep.subr.bf16.mxu0 0
          %663 = vmatpush1.bf16.msra.mxu0 0
          %664 = vmatprep.subr.bf16.mxu0 0
          %665 = vmatpush1.bf16.msra.mxu0 0
          %666 = vmatprep.subr.bf16.mxu0 0
          %667 = vmatpush1.bf16.msra.mxu0 0
          %668 = vmatprep.subr.bf16.mxu0 0
          %669 = vmatpush1.bf16.msra.mxu0 0
          %670 = vmatprep.subr.bf16.mxu0 0
          %671 = vmatpush1.bf16.msra.mxu0 0
          %672 = vmatprep.subr.bf16.mxu0 0
          %673 = vmatpush1.bf16.msra.mxu0 0
          %674 = vmatprep.subr.bf16.mxu0 0
          %675 = vmatpush1.bf16.msra.mxu0 0
          %676 = vmatprep.subr.bf16.mxu0 0
          %677 = vmatpush1.bf16.msra.mxu0 0
          %678 = vmatprep.subr.bf16.mxu0 0
          %679 = vmatpush1.bf16.msra.mxu0 0
          %680 = vmatprep.subr.bf16.mxu0 0
          %681 = vmatpush1.bf16.msra.mxu0 0
          %682 = vmatprep.subr.bf16.mxu0 0
          %683 = vmatpush1.bf16.msra.mxu0 0
          %684 = vmatprep.subr.bf16.mxu0 0
          %685 = vmatpush1.bf16.msra.mxu0 0
          %686 = vmatprep.subr.bf16.mxu0 0
          %687 = vmatpush1.bf16.msra.mxu0 0
          %688 = vmatprep.mubr.bf16.mxu0 0
          %689 = vmatmul.mubr.bf16.gmra.mrb[0].mxu0 %v654
          %v690 = vpop.f32.mrb[0].mxu0
          %v691 = vadd.f32 %v636, %v690
          %v692 = vpop.f32.mrb[0].mxu0
          %v693 = vpop.f32.mrb[0].mxu0
          %v694 = vpop.f32.mrb[0].mxu0
          %695 = vdwg.mxu0
          %v696 = vld [vmem:[%s4] sm:$0x1]
          %v698 = vlaneseq
          %v699 = vshrl.u32 %v698, 7
          %v700 = vsub.s32 0, %v699
          %v701 = vrot.slane %v696, %v700
          %v703 = vadd.f32 %v691, %v701
          %v704 = vmax.f32 %v703, 0.0
          %v705 = vpack.c.bf16 %v704, %v704
          %v706 = vld [vmem:[%s5] sm:$0xf]
          %v707 = vld [vmem:[%s5 + $0x4] sm:$0xf]
          %v708 = vld [vmem:[%s5 + $0x8] sm:$0xf]
          %v709 = vld [vmem:[%s5 + $0xc] sm:$0xf]
          %v710 = vld [vmem:[%s6] sm:$0x1]
          %v712 = vlaneseq
          %v713 = vshrl.u32 %v712, 7
          %v714 = vsub.s32 0, %v713
          %v715 = vrot.slane %v710, %v714
          %v721 = vunpack.c.l.b16 %v706
          %v722 = vunpack.c.l.b16 %v707
          %v723 = vunpack.c.l.b16 %v708
          %v724 = vunpack.c.l.b16 %v709
          %v725 = vpack.c.b16 %v722, %v721
          %v726 = vpack.c.b16 %v724, %v723
          %v730 = vsel %vm498, %v705, 0
          %732 = vmatprep.subr.bf16.mxu0 0
          %733 = vmatpush1.bf16.msra.mxu0 %v725
          %734 = vmatprep.subr.bf16.mxu0 0
          %735 = vmatpush1.bf16.msra.mxu0 %v726
          %736 = vmatprep.subr.bf16.mxu0 0
          %737 = vmatpush1.bf16.msra.mxu0 0
          %738 = vmatprep.subr.bf16.mxu0 0
          %739 = vmatpush1.bf16.msra.mxu0 0
          %740 = vmatprep.subr.bf16.mxu0 0
          %741 = vmatpush1.bf16.msra.mxu0 0
          %742 = vmatprep.subr.bf16.mxu0 0
          %743 = vmatpush1.bf16.msra.mxu0 0
          %744 = vmatprep.subr.bf16.mxu0 0
          %745 = vmatpush1.bf16.msra.mxu0 0
          %746 = vmatprep.subr.bf16.mxu0 0
          %747 = vmatpush1.bf16.msra.mxu0 0
          %748 = vmatprep.subr.bf16.mxu0 0
          %749 = vmatpush1.bf16.msra.mxu0 0
          %750 = vmatprep.subr.bf16.mxu0 0
          %751 = vmatpush1.bf16.msra.mxu0 0
          %752 = vmatprep.subr.bf16.mxu0 0
          %753 = vmatpush1.bf16.msra.mxu0 0
          %754 = vmatprep.subr.bf16.mxu0 0
          %755 = vmatpush1.bf16.msra.mxu0 0
          %756 = vmatprep.subr.bf16.mxu0 0
          %757 = vmatpush1.bf16.msra.mxu0 0
          %758 = vmatprep.subr.bf16.mxu0 0
          %759 = vmatpush1.bf16.msra.mxu0 0
          %760 = vmatprep.subr.bf16.mxu0 0
          %761 = vmatpush1.bf16.msra.mxu0 0
          %762 = vmatprep.subr.bf16.mxu0 0
          %763 = vmatpush1.bf16.msra.mxu0 0
          %764 = vmatprep.mubr.bf16.mxu0 0
          %765 = vmatmul.mubr.bf16.gmra.mrb[0].mxu0 %v730
          %v766 = vpop.f32.mrb[0].mxu0
          %v767 = vadd.f32 %v715, %v766
          %v768 = vpop.f32.mrb[0].mxu0
          %v769 = vpop.f32.mrb[0].mxu0
          %v770 = vpop.f32.mrb[0].mxu0
          %771 = vdwg.mxu0
          %v772 = vmax.f32 %v767, 0.0
          %v773 = vld [vmem:[%s7] sm:$0x1]
          %v775 = vlaneseq
          %v776 = vshrl.u32 %v775, 7
          %v777 = vsub.s32 0, %v776
          %v778 = vrot.slane %v773, %v777
          %v780 = vmul.f32 %v772, %v778
          %vm781 = vcmask 123904
          %v782 = vsel %vm781, %v780, 0.0
          %783 = vadd.xlane.f32.xlu0 %v782
          %v784 = vpop.xlane.xlu0 %783
          %v785 = vld [vmem:[#allocation4] sm:$0x1]
          %v787 = vlaneseq
          %v788 = vshrl.u32 %v787, 7
          %v789 = vsub.s32 0, %v788
          %v790 = vrot.slane %v785, %v789
          %v792 = vadd.f32 %v784, %v790
          %v793 = vxor.u32 %v792, 2147483648
          %v794 = vmul.f32 %v793, 1.442695
          %v795 = vpow.pop %v794
          %v796 = vadd.f32 %v795, 1.0
          %v797 = vrcp.pop %v796
          %v798 = vmul.f32 1.0, %v797
          %800 = vset.pattern.permute.xlu0 0
          %801 = vperm.xlu0 %800, %v798
          %v802 = vpop.permute.xlu0 %801
          %804 = vst [vmem:[#allocation7] sm:$0x3] %v802
        $region146: #{tpu_custom_call.1} parent=129 // pred_fallthru
          _
        // Predicated region
        $region147: #{tpu_custom_call.1} parent=129 // pred_check
          %p805 = pneg %p256
        $region148: #{tpu_custom_call.1} parent=129 // pred_check_branch
          %807 = sbr.rel (%p805) target = $region150
        $region149: #{tpu_custom_call.1} parent=129 // pred_region
          %s809 = ssub.s32 32, 32
          %810 = vsyncadd [#allocation8], %s809
          %s811 = smul.addr %s27, 32
          %s812 = scalar_lea.hbm %s9, %s811
          %s814 = sshll.u32 [#allocation7], 4
          %s815 = int_to_ptr.vmem [resolvable:$true] %s814
          %817 = dma.vmem_to_hbm [thread:$0]  %s815, 32, %s812, [#allocation8]
        $region150: #{tpu_custom_call.1} parent=129 // pred_fallthru
          _
        // Predicated region
        $region151: #{tpu_custom_call.1} parent=129 // pred_check
          %p818 = pneg %p256
        $region152: #{tpu_custom_call.1} parent=129 // pred_check_branch
          %820 = sbr.rel (%p818) target = $region154
        $region153: #{tpu_custom_call.1} parent=129 // pred_region
          %821 = dma.done [#allocation8], 32
        $region154: #{tpu_custom_call.1} parent=129 // pred_fallthru
          _
      $region130: #{tpu_custom_call.1} parent=5 // pred_fallthru
        _
      %p822 = scmp.le.s32.totalorder 2, %s18
      // Predicated region
      $region155: #{tpu_custom_call.1} parent=5 // pred_check
        %p823 = pneg %p822
      $region156: #{tpu_custom_call.1} parent=5 // pred_check_branch
        %825 = sbr.rel (%p823) target = $region158
      $region157: #{tpu_custom_call.1} parent=5 // pred_region
        %s826 = ssub.s32 %s18, 2
      $region158: #{tpu_custom_call.1} parent=5 // pred_fallthru
        _
    $region6: #{tpu_custom_call.1} parent=1 // loop_footer
      %s22 = sadd.s32 1, %s18
    $region7: #{tpu_custom_call.1} parent=1 // loop_footer_branch
      %17 = sbr.rel target = $region3
    $region8: #{tpu_custom_call.1} parent=1 // loop_exit
      _
    %827 = vsyncpa [#allocation8], 1
    %s828 = scalar_lea.sflag [#allocation8], 1
    %829 = vsyncpa %s828, 1

// kernel: tpu_custom_call.1
$region0: #{tpu_custom_call.1}
  #allocation0 [shape = 'u32[]', space=smem, size = 0x4, offset = 0x4, fixed_abs, tag = 'smem constant byte address 0x4 - core index']
  #allocation1 [shape = 'u32[144,128]{1,0:T(1,128)}', space=vmem, size = 0x12000, scoped, tag = 'internal scratch']
  #allocation2 [shape = 'f32[2,32]{1,0:T(2,128)}', space=vmem, size = 0x400, scoped, tag = 'scratch operand']
  #allocation3 [shape = 'f32[2,48]{1,0:T(2,128)}', space=vmem, size = 0x400, scoped, tag = 'scratch operand']
  #allocation4 [shape = 'f32[1,1]{1,0:T(1,128)S(1)}', space=vmem, size = 0x200, scoped, tag = 'scoped memory for tpu_custom_call.1']
  %s0 = inlined_call_operand.vmem [shape: bf16[2,48,32], index: 0, kind: input, shape index: {}]
  %s1 = inlined_call_operand.vmem [shape: bf16[2,48,48], index: 1, kind: input, shape index: {}]
  %s2 = inlined_call_operand.vmem [shape: bf16[32,32], index: 2, kind: input, shape index: {}]
  %s3 = inlined_call_operand.vmem [shape: bf16[48,32], index: 3, kind: input, shape index: {}]
  %s4 = inlined_call_operand.vmem [shape: f32[1,32], index: 4, kind: input, shape index: {}]
  %s5 = inlined_call_operand.vmem [shape: bf16[32,16], index: 5, kind: input, shape index: {}]
  %s6 = inlined_call_operand.vmem [shape: f32[1,16], index: 6, kind: input, shape index: {}]
  %s7 = inlined_call_operand.vmem [shape: f32[1,16], index: 7, kind: input, shape index: {}]
  %s8 = inlined_call_operand.<no memory space> [shape: f32[1,1], index: 8, kind: input, shape index: {}]
  %s9 = inlined_call_operand.hbm [shape: f32[2,128], index: 9, kind: output, shape index: {}]
  %s10 = sld [smem:[#allocation0]]
  $region159: #{tpu_custom_call.1} parent=0
    _
  %s12 = ssub.s32 1, %s10
  %s13 = scalar_select 0, %s12, %s10
  %v14 = vstv %s8
  %15 = vst [vmem:[#allocation4] sm:$0x1] %v14
  $region1: #{tpu_custom_call.1} parent=0
    #allocation5 [shape = 'u8[16384]{0}', space=vmem, size = 0x4000, scoped, tag = 'input window, operand 0']
    #allocation6 [shape = 'u8[16384]{0}', space=vmem, size = 0x4000, scoped, tag = 'input window, operand 1']
    #allocation7 [shape = 'u8[1024]{0}', space=vmem, size = 0x400, scoped, tag = 'output window, operand 0, single buffered']
    #allocation8 [shape = 's32[2]{0}', space=sflag, size = 0x8, scoped, tag = 'scoped memory for tpu_custom_call.1']
    %16 = vsyncpa [#allocation8], 0
    loop: start=0, step=1, limit=5
    $region2: #{tpu_custom_call.1} parent=1 // loop_pre_header
      _
    $region3: #{tpu_custom_call.1} parent=1 // loop_header
      %s18 = sphi 0, %s22
      %p19 = scmp.ge.s32.totalorder %s18, 5
      %s25 = sphi 0, %s37
      %s26 = sphi 0, %s33
      %s27 = sphi 0, %s25
      %s28 = sphi 0, %s26
      %s29 = sphi 0, %s27
      %s30 = sphi 0, %s28
      %s42 = sphi 0, %s44
      %s45 = sphi 0, %s42
      %s46 = sphi 0, %s45
      %s62 = sphi 0, %s46
      %s70 = sphi 0, %s72
      %s73 = sphi 0, %s70
      %s74 = sphi 0, %s73
      %s90 = sphi 0, %s74
      %s94 = sphi 0, %s94
      %s96 = sphi 0, %s94
      %s97 = sphi 0, %s96
      %s111 = sphi 0, %s97
      %s115 = sphi 0, %s115
      %s117 = sphi 0, %s115
      %s118 = sphi 0, %s117
      %s132 = sphi 0, %s118
      %s136 = sphi 0, %s136
      %s138 = sphi 0, %s136
      %s139 = sphi 0, %s138
      %s153 = sphi 0, %s139
      %s157 = sphi 0, %s157
      %s159 = sphi 0, %s157
      %s160 = sphi 0, %s159
      %s174 = sphi 0, %s160
      %s178 = sphi 0, %s178
      %s180 = sphi 0, %s178
      %s181 = sphi 0, %s180
      %s195 = sphi 0, %s181
      %s199 = sphi 0, %s199
      %s201 = sphi 0, %s199
      %s202 = sphi 0, %s201
      %s216 = sphi 0, %s202
      %s220 = sphi 0, %s220
      %s222 = sphi 0, %s220
      %s223 = sphi 0, %s222
      %s237 = sphi 0, %s223
      %s243 = sphi 0, %s245
      %s246 = sphi 0, %s243
      %s247 = sphi 0, %s246
      %s263 = sphi 0, %s247
    $region4: #{tpu_custom_call.1} parent=1 // loop_header_branch
      %21 = sbr.rel (%p19) target = $region8
    $region5: #{tpu_custom_call.1} parent=1 // loop_body
      %s23 = ssub.s32 %s18, 1
      %s24 = ssub.s32 %s18, 2
      %s31 = sadd.s32 1, %s26
      %p32 = scmp.ge.s32.totalorder %s31, 3
      %s33 = scalar_select %p32, 0, %s31
      %s34 = sadd.s32 1, %s25
      %s35 = scalar_select %p32, %s34, %s25
      %p36 = scmp.ge.s32.totalorder %s35, 1
      %s37 = scalar_select %p36, 0, %s35
      %s38 = ssub.s32 %s25, %s37
      %s39 = ssub.s32 %s26, %s33
      %s40 = sor.u32 %s38, %s39
      %p41 = scmp.eq.s32.totalorder %s40, 0
      %s43 = sadd.s32 %s42, 1
      %s44 = scalar_select %p41, %s42, %s43
      %p47 = pneg %p41
      %p48 = scmp.eq.s32.totalorder %s18, 2
      %p49 = por %p47, %p48
      %p50 = scmp.ne.s32.totalorder %s42, %s45
      %p51 = scmp.eq.s32.totalorder %s18, 0
      %p52 = por %p50, %p51
      %p53 = scmp.ne.s32.totalorder %s42, %s45
      %p54 = scmp.eq.s32.totalorder %s23, 2
      %p55 = por %p53, %p54
      %p56 = scmp.ne.s32.totalorder %s45, %s46
      %p57 = scmp.eq.s32.totalorder %s23, 0
      %p58 = por %p56, %p57
      %p59 = scmp.ne.s32.totalorder %s45, %s46
      %p60 = scmp.eq.s32.totalorder %s24, 2
      %p61 = por %p59, %p60
      %p63 = scmp.ne.s32.totalorder %s46, %s62
      %p64 = scmp.eq.s32.totalorder %s24, 0
      %p65 = por %p63, %p64
      %s66 = ssub.s32 %s25, %s37
      %s67 = ssub.s32 %s26, %s33
      %s68 = sor.u32 %s66, %s67
      %p69 = scmp.eq.s32.totalorder %s68, 0
      %s71 = sadd.s32 %s70, 1
      %s72 = scalar_select %p69, %s70, %s71
      %p75 = pneg %p69
      %p76 = scmp.eq.s32.totalorder %s18, 2
      %p77 = por %p75, %p76
      %p78 = scmp.ne.s32.totalorder %s70, %s73
      %p79 = scmp.eq.s32.totalorder %s18, 0
      %p80 = por %p78, %p79
      %p81 = scmp.ne.s32.totalorder %s70, %s73
      %p82 = scmp.eq.s32.totalorder %s23, 2
      %p83 = por %p81, %p82
      %p84 = scmp.ne.s32.totalorder %s73, %s74
      %p85 = scmp.eq.s32.totalorder %s23, 0
      %p86 = por %p84, %p85
      %p87 = scmp.ne.s32.totalorder %s73, %s74
      %p88 = scmp.eq.s32.totalorder %s24, 2
      %p89 = por %p87, %p88
      %p91 = scmp.ne.s32.totalorder %s74, %s90
      %p92 = scmp.eq.s32.totalorder %s24, 0
      %p93 = por %p91, %p92
      %s95 = sadd.s32 %s94, 1
      %p98 = scmp.eq.s32.totalorder %s18, 2
      %p99 = scmp.ne.s32.totalorder %s94, %s96
      %p100 = scmp.eq.s32.totalorder %s18, 0
      %p101 = por %p99, %p100
      %p102 = scmp.ne.s32.totalorder %s94, %s96
      %p103 = scmp.eq.s32.totalorder %s23, 2
      %p104 = por %p102, %p103
      %p105 = scmp.ne.s32.totalorder %s96, %s97
      %p106 = scmp.eq.s32.totalorder %s23, 0
      %p107 = por %p105, %p106
      %p108 = scmp.ne.s32.totalorder %s96, %s97
      %p109 = scmp.eq.s32.totalorder %s24, 2
      %p110 = por %p108, %p109
      %p112 = scmp.ne.s32.totalorder %s97, %s111
      %p113 = scmp.eq.s32.totalorder %s24, 0
      %p114 = por %p112, %p113
      %s116 = sadd.s32 %s115, 1
      %p119 = scmp.eq.s32.totalorder %s18, 2
      %p120 = scmp.ne.s32.totalorder %s115, %s117
      %p121 = scmp.eq.s32.totalorder %s18, 0
      %p122 = por %p120, %p121
      %p123 = scmp.ne.s32.totalorder %s115, %s117
      %p124 = scmp.eq.s32.totalorder %s23, 2
      %p125 = por %p123, %p124
      %p126 = scmp.ne.s32.totalorder %s117, %s118
      %p127 = scmp.eq.s32.totalorder %s23, 0
      %p128 = por %p126, %p127
      %p129 = scmp.ne.s32.totalorder %s117, %s118
      %p130 = scmp.eq.s32.totalorder %s24, 2
      %p131 = por %p129, %p130
      %p133 = scmp.ne.s32.totalorder %s118, %s132
      %p134 = scmp.eq.s32.totalorder %s24, 0
      %p135 = por %p133, %p134
      %s137 = sadd.s32 %s136, 1
      %p140 = scmp.eq.s32.totalorder %s18, 2
      %p141 = scmp.ne.s32.totalorder %s136, %s138
      %p142 = scmp.eq.s32.totalorder %s18, 0
      %p143 = por %p141, %p142
      %p144 = scmp.ne.s32.totalorder %s136, %s138
      %p145 = scmp.eq.s32.totalorder %s23, 2
      %p146 = por %p144, %p145
      %p147 = scmp.ne.s32.totalorder %s138, %s139
      %p148 = scmp.eq.s32.totalorder %s23, 0
      %p149 = por %p147, %p148
      %p150 = scmp.ne.s32.totalorder %s138, %s139
      %p151 = scmp.eq.s32.totalorder %s24, 2
      %p152 = por %p150, %p151
      %p154 = scmp.ne.s32.totalorder %s139, %s153
      %p155 = scmp.eq.s32.totalorder %s24, 0
      %p156 = por %p154, %p155
      %s158 = sadd.s32 %s157, 1
      %p161 = scmp.eq.s32.totalorder %s18, 2
      %p162 = scmp.ne.s32.totalorder %s157, %s159
      %p163 = scmp.eq.s32.totalorder %s18, 0
      %p164 = por %p162, %p163
      %p165 = scmp.ne.s32.totalorder %s157, %s159
      %p166 = scmp.eq.s32.totalorder %s23, 2
      %p167 = por %p165, %p166
      %p168 = scmp.ne.s32.totalorder %s159, %s160
      %p169 = scmp.eq.s32.totalorder %s23, 0
      %p170 = por %p168, %p169
      %p171 = scmp.ne.s32.totalorder %s159, %s160
      %p172 = scmp.eq.s32.totalorder %s24, 2
      %p173 = por %p171, %p172
      %p175 = scmp.ne.s32.totalorder %s160, %s174
      %p176 = scmp.eq.s32.totalorder %s24, 0
      %p177 = por %p175, %p176
      %s179 = sadd.s32 %s178, 1
      %p182 = scmp.eq.s32.totalorder %s18, 2
      %p183 = scmp.ne.s32.totalorder %s178, %s180
      %p184 = scmp.eq.s32.totalorder %s18, 0
      %p185 = por %p183, %p184
      %p186 = scmp.ne.s32.totalorder %s178, %s180
      %p187 = scmp.eq.s32.totalorder %s23, 2
      %p188 = por %p186, %p187
      %p189 = scmp.ne.s32.totalorder %s180, %s181
      %p190 = scmp.eq.s32.totalorder %s23, 0
      %p191 = por %p189, %p190
      %p192 = scmp.ne.s32.totalorder %s180, %s181
      %p193 = scmp.eq.s32.totalorder %s24, 2
      %p194 = por %p192, %p193
      %p196 = scmp.ne.s32.totalorder %s181, %s195
      %p197 = scmp.eq.s32.totalorder %s24, 0
      %p198 = por %p196, %p197
      %s200 = sadd.s32 %s199, 1
      %p203 = scmp.eq.s32.totalorder %s18, 2
      %p204 = scmp.ne.s32.totalorder %s199, %s201
      %p205 = scmp.eq.s32.totalorder %s18, 0
      %p206 = por %p204, %p205
      %p207 = scmp.ne.s32.totalorder %s199, %s201
      %p208 = scmp.eq.s32.totalorder %s23, 2
      %p209 = por %p207, %p208
      %p210 = scmp.ne.s32.totalorder %s201, %s202
      %p211 = scmp.eq.s32.totalorder %s23, 0
      %p212 = por %p210, %p211
      %p213 = scmp.ne.s32.totalorder %s201, %s202
      %p214 = scmp.eq.s32.totalorder %s24, 2
      %p215 = por %p213, %p214
      %p217 = scmp.ne.s32.totalorder %s202, %s216
      %p218 = scmp.eq.s32.totalorder %s24, 0
      %p219 = por %p217, %p218
      %s221 = sadd.s32 %s220, 1
      %p224 = scmp.eq.s32.totalorder %s18, 2
      %p225 = scmp.ne.s32.totalorder %s220, %s222
      %p226 = scmp.eq.s32.totalorder %s18, 0
      %p227 = por %p225, %p226
      %p228 = scmp.ne.s32.totalorder %s220, %s222
      %p229 = scmp.eq.s32.totalorder %s23, 2
      %p230 = por %p228, %p229
      %p231 = scmp.ne.s32.totalorder %s222, %s223
      %p232 = scmp.eq.s32.totalorder %s23, 0
      %p233 = por %p231, %p232
      %p234 = scmp.ne.s32.totalorder %s222, %s223
      %p235 = scmp.eq.s32.totalorder %s24, 2
      %p236 = por %p234, %p235
      %p238 = scmp.ne.s32.totalorder %s223, %s237
      %p239 = scmp.eq.s32.totalorder %s24, 0
      %p240 = por %p238, %p239
      %s241 = ssub.s32 %s25, %s37
      %p242 = scmp.eq.s32.totalorder %s241, 0
      %s244 = sadd.s32 %s243, 1
      %s245 = scalar_select %p242, %s243, %s244
      %p248 = pneg %p242
      %p249 = scmp.eq.s32.totalorder %s18, 2
      %p250 = por %p248, %p249
      %p251 = scmp.ne.s32.totalorder %s243, %s246
      %p252 = scmp.eq.s32.totalorder %s18, 0
      %p253 = por %p251, %p252
      %p254 = scmp.ne.s32.totalorder %s243, %s246
      %p255 = scmp.eq.s32.totalorder %s23, 2
      %p256 = por %p254, %p255
      %p257 = scmp.ne.s32.totalorder %s246, %s247
      %p258 = scmp.eq.s32.totalorder %s23, 0
      %p259 = por %p257, %p258
      %p260 = scmp.ne.s32.totalorder %s246, %s247
      %p261 = scmp.eq.s32.totalorder %s24, 2
      %p262 = por %p260, %p261
      %p264 = scmp.ne.s32.totalorder %s247, %s263
      %p265 = scmp.eq.s32.totalorder %s24, 0
      %p266 = por %p264, %p265
      %p267 = scmp.le.s32.totalorder 1, %s18
      %p268 = scmp.lt.s32.totalorder %s18, 4
      %p269 = pnand %p267, %p268
      %p270 = pneg %p269
      // Predicated region
      $region9: #{tpu_custom_call.1} parent=5 // pred_check
        _
      $region10: #{tpu_custom_call.1} parent=5 // pred_check_branch
        %272 = sbr.rel (%p269) target = $region12
      $region11: #{tpu_custom_call.1} parent=5 // pred_region
        %s273 = ssub.s32 %s18, 1
        // Predicated region
        $region13: #{tpu_custom_call.1} parent=11 // pred_check
          %p274 = pneg %p107
        $region14: #{tpu_custom_call.1} parent=11 // pred_check_branch
          %276 = sbr.rel (%p274) target = $region16
        $region15: #{tpu_custom_call.1} parent=11 // pred_region
          _
        $region16: #{tpu_custom_call.1} parent=11 // pred_fallthru
          _
        // Predicated region
        $region17: #{tpu_custom_call.1} parent=11 // pred_check
          %p277 = pneg %p128
        $region18: #{tpu_custom_call.1} parent=11 // pred_check_branch
          %279 = sbr.rel (%p277) target = $region20
        $region19: #{tpu_custom_call.1} parent=11 // pred_region
          _
        $region20: #{tpu_custom_call.1} parent=11 // pred_fallthru
          _
        // Predicated region
        $region21: #{tpu_custom_call.1} parent=11 // pred_check
          %p280 = pneg %p149
        $region22: #{tpu_custom_call.1} parent=11 // pred_check_branch
          %282 = sbr.rel (%p280) target = $region24
        $region23: #{tpu_custom_call.1} parent=11 // pred_region
          _
        $region24: #{tpu_custom_call.1} parent=11 // pred_fallthru
          _
        // Predicated region
        $region25: #{tpu_custom_call.1} parent=11 // pred_check
          %p283 = pneg %p170
        $region26: #{tpu_custom_call.1} parent=11 // pred_check_branch
          %285 = sbr.rel (%p283) target = $region28
        $region27: #{tpu_custom_call.1} parent=11 // pred_region
          _
        $region28: #{tpu_custom_call.1} parent=11 // pred_fallthru
          _
        // Predicated region
        $region29: #{tpu_custom_call.1} parent=11 // pred_check
          %p286 = pneg %p191
        $region30: #{tpu_custom_call.1} parent=11 // pred_check_branch
          %288 = sbr.rel (%p286) target = $region32
        $region31: #{tpu_custom_call.1} parent=11 // pred_region
          _
        $region32: #{tpu_custom_call.1} parent=11 // pred_fallthru
          _
        // Predicated region
        $region33: #{tpu_custom_call.1} parent=11 // pred_check
          %p289 = pneg %p212
        $region34: #{tpu_custom_call.1} parent=11 // pred_check_branch
          %291 = sbr.rel (%p289) target = $region36
        $region35: #{tpu_custom_call.1} parent=11 // pred_region
          _
        $region36: #{tpu_custom_call.1} parent=11 // pred_fallthru
          _
        // Predicated region
        $region37: #{tpu_custom_call.1} parent=11 // pred_check
          %p292 = pneg %p233
        $region38: #{tpu_custom_call.1} parent=11 // pred_check_branch
          %294 = sbr.rel (%p292) target = $region40
        $region39: #{tpu_custom_call.1} parent=11 // pred_region
          _
        $region40: #{tpu_custom_call.1} parent=11 // pred_fallthru
          _
      $region12: #{tpu_custom_call.1} parent=5 // pred_fallthru
        _
      %p295 = scmp.lt.s32.totalorder %s18, 3
      // Predicated region
      $region41: #{tpu_custom_call.1} parent=5 // pred_check
        %p296 = pneg %p295
      $region42: #{tpu_custom_call.1} parent=5 // pred_check_branch
        %298 = sbr.rel (%p296) target = $region44
      $region43: #{tpu_custom_call.1} parent=5 // pred_region
        // Predicated region
        $region45: #{tpu_custom_call.1} parent=43 // pred_check
          %p299 = pneg %p52
        $region46: #{tpu_custom_call.1} parent=43 // pred_check_branch
          %301 = sbr.rel (%p299) target = $region48
        $region47: #{tpu_custom_call.1} parent=43 // pred_region
          %s302 = sand.u32 %s42, 1
          %s303 = sand.u32 %s42, 1
          %s304 = smul.addr %s303, 16
          %s305 = scalar_lea.vmem [#allocation5], %s304
          %s306 = smul.u32 2, %s25
          %s307 = smul.u32 2, %s26
          %s308 = smul.addr %s306, 6
          %s309 = sadd.s32 %s307, %s308
          %s310 = smul.addr %s309, 4
          %s311 = scalar_lea.vmem %s0, %s310
          // Predicated region
          $region49: #{tpu_custom_call.1} parent=47 // pred_check
            _
          $region50: #{tpu_custom_call.1} parent=47 // pred_check_branch
            %313 = sbr.rel (0) target = $region52
          $region51: #{tpu_custom_call.1} parent=47 // pred_region
            // Predicated region
            $region53: #{tpu_custom_call.1} parent=51 // pred_check
              _
            $region54: #{tpu_custom_call.1} parent=51 // pred_check_branch
              %315 = sbr.rel target = $region56
            $region55: #{tpu_custom_call.1} parent=51 // pred_region
              // Predicated region
              $region68: #{tpu_custom_call.1} parent=55 // pred_check
                _
              $region69: #{tpu_custom_call.1} parent=55 // pred_check_branch
                %336 = sbr.rel (0) target = $region71
              $region70: #{tpu_custom_call.1} parent=55 // pred_region
                loop: start=0, step=1, limit=1
                $region72: #{tpu_custom_call.1} parent=70 // loop_pre_header
                  _
                $region73: #{tpu_custom_call.1} parent=70 // loop_header
                  %s338 = sphi 0, %s342
                  %p339 = scmp.ge.s32.totalorder %s338, 1
                  %s343 = sphi %s311, %s311
                  %s344 = sphi %s305, %s305
                $region74: #{tpu_custom_call.1} parent=70 // loop_header_branch
                  %341 = sbr.rel (%p339) target = $region78
                $region75: #{tpu_custom_call.1} parent=70 // loop_body
                  _
                $region76: #{tpu_custom_call.1} parent=70 // loop_footer
                  %s342 = sadd.s32 1, %s338
                $region77: #{tpu_custom_call.1} parent=70 // loop_footer_branch
                  %337 = sbr.rel target = $region73
                $region78: #{tpu_custom_call.1} parent=70 // loop_exit
                  _
                loop: start=0, step=1, limit=1
                $region79: #{tpu_custom_call.1} parent=70 // loop_pre_header
                  _
                $region80: #{tpu_custom_call.1} parent=70 // loop_header
                  %s347 = sphi 0, %s351
                  %p348 = scmp.ge.s32.totalorder %s347, 1
                  %s352 = sphi %s311, %s311
                  %s353 = sphi %s305, %s305
                $region81: #{tpu_custom_call.1} parent=70 // loop_header_branch
                  %350 = sbr.rel (%p348) target = $region85
                $region82: #{tpu_custom_call.1} parent=70 // loop_body
                  %v354 = vld [vmem:[%s352] sm:$0xf]
                  %355 = vst [vmem:[%s353] sm:$0xf] %v354
                  %v356 = vld [vmem:[%s352 + $0x4] sm:$0xf]
                  %357 = vst [vmem:[%s353 + $0x4] sm:$0xf] %v356
                  %v358 = vld [vmem:[%s352 + $0x18] sm:$0xf]
                  %359 = vst [vmem:[%s353 + $0x8] sm:$0xf] %v358
                  %v360 = vld [vmem:[%s352 + $0x1c] sm:$0xf]
                  %361 = vst [vmem:[%s353 + $0xc] sm:$0xf] %v360
                $region83: #{tpu_custom_call.1} parent=70 // loop_footer
                  %s351 = sadd.s32 1, %s347
                $region84: #{tpu_custom_call.1} parent=70 // loop_footer_branch
                  %346 = sbr.rel target = $region80
                $region85: #{tpu_custom_call.1} parent=70 // loop_exit
                  _
              $region71: #{tpu_custom_call.1} parent=55 // pred_fallthru
                _
            $region56: #{tpu_custom_call.1} parent=51 // pred_fallthru
              _
            // Predicated region
            $region57: #{tpu_custom_call.1} parent=51 // pred_check
              _
            $region58: #{tpu_custom_call.1} parent=51 // pred_check_branch
              %317 = sbr.rel (0) target = $region60
            $region59: #{tpu_custom_call.1} parent=51 // pred_region
              loop: start=0, step=1, limit=1
              $region61: #{tpu_custom_call.1} parent=59 // loop_pre_header
                _
              $region62: #{tpu_custom_call.1} parent=59 // loop_header
                %s320 = sphi 0, %s324
                %p321 = scmp.ge.s32.totalorder %s320, 1
                %s325 = sphi %s311, %s311
                %s326 = sphi %s305, %s305
              $region63: #{tpu_custom_call.1} parent=59 // loop_header_branch
                %323 = sbr.rel (%p321) target = $region67
              $region64: #{tpu_custom_call.1} parent=59 // loop_body
                %v327 = vld [vmem:[%s325] sm:$0xf]
                %328 = vst [vmem:[%s326] sm:$0xf] %v327
                %v329 = vld [vmem:[%s325 + $0x4] sm:$0xf]
                %330 = vst [vmem:[%s326 + $0x4] sm:$0xf] %v329
                %v331 = vld [vmem:[%s325 + $0x18] sm:$0xf]
                %332 = vst [vmem:[%s326 + $0x8] sm:$0xf] %v331
                %v333 = vld [vmem:[%s325 + $0x1c] sm:$0xf]
                %334 = vst [vmem:[%s326 + $0xc] sm:$0xf] %v333
              $region65: #{tpu_custom_call.1} parent=59 // loop_footer
                %s324 = sadd.s32 1, %s320
              $region66: #{tpu_custom_call.1} parent=59 // loop_footer_branch
                %319 = sbr.rel target = $region62
              $region67: #{tpu_custom_call.1} parent=59 // loop_exit
                _
            $region60: #{tpu_custom_call.1} parent=51 // pred_fallthru
              _
          $region52: #{tpu_custom_call.1} parent=47 // pred_fallthru
            _
          %362 = vnop
        $region48: #{tpu_custom_call.1} parent=43 // pred_fallthru
          _
        // Predicated region
        $region86: #{tpu_custom_call.1} parent=43 // pred_check
          %p363 = pneg %p80
        $region87: #{tpu_custom_call.1} parent=43 // pred_check_branch
          %365 = sbr.rel (%p363) target = $region89
        $region88: #{tpu_custom_call.1} parent=43 // pred_region
          %s366 = sand.u32 %s70, 1
          %s367 = sand.u32 %s70, 1
          %s368 = smul.addr %s367, 16
          %s369 = scalar_lea.vmem [#allocation6], %s368
          %s370 = smul.u32 2, %s25
          %s371 = smul.u32 2, %s26
          %s372 = smul.addr %s370, 6
          %s373 = sadd.s32 %s371, %s372
          %s374 = smul.addr %s373, 4
          %s375 = scalar_lea.vmem %s1, %s374
          // Predicated region
          $region90: #{tpu_custom_call.1} parent=88 // pred_check
            _
          $region91: #{tpu_custom_call.1} parent=88 // pred_check_branch
            %377 = sbr.rel (0) target = $region93
          $region92: #{tpu_custom_call.1} parent=88 // pred_region
            // Predicated region
            $region94: #{tpu_custom_call.1} parent=92 // pred_check
              _
            $region95: #{tpu_custom_call.1} parent=92 // pred_check_branch
              %379 = sbr.rel target = $region97
            $region96: #{tpu_custom_call.1} parent=92 // pred_region
              // Predicated region
              $region109: #{tpu_custom_call.1} parent=96 // pred_check
                _
              $region110: #{tpu_custom_call.1} parent=96 // pred_check_branch
                %400 = sbr.rel (0) target = $region112
              $region111: #{tpu_custom_call.1} parent=96 // pred_region
                loop: start=0, step=1, limit=1
                $region113: #{tpu_custom_call.1} parent=111 // loop_pre_header
                  _
                $region114: #{tpu_custom_call.1} parent=111 // loop_header
                  %s402 = sphi 0, %s406
                  %p403 = scmp.ge.s32.totalorder %s402, 1
                  %s407 = sphi %s375, %s375
                  %s408 = sphi %s369, %s369
                $region115: #{tpu_custom_call.1} parent=111 // loop_header_branch
                  %405 = sbr.rel (%p403) target = $region119
                $region116: #{tpu_custom_call.1} parent=111 // loop_body
                  _
                $region117: #{tpu_custom_call.1} parent=111 // loop_footer
                  %s406 = sadd.s32 1, %s402
                $region118: #{tpu_custom_call.1} parent=111 // loop_footer_branch
                  %401 = sbr.rel target = $region114
                $region119: #{tpu_custom_call.1} parent=111 // loop_exit
                  _
                loop: start=0, step=1, limit=1
                $region120: #{tpu_custom_call.1} parent=111 // loop_pre_header
                  _
                $region121: #{tpu_custom_call.1} parent=111 // loop_header
                  %s411 = sphi 0, %s415
                  %p412 = scmp.ge.s32.totalorder %s411, 1
                  %s416 = sphi %s375, %s375
                  %s417 = sphi %s369, %s369
                $region122: #{tpu_custom_call.1} parent=111 // loop_header_branch
                  %414 = sbr.rel (%p412) target = $region126
                $region123: #{tpu_custom_call.1} parent=111 // loop_body
                  %v418 = vld [vmem:[%s416] sm:$0xf]
                  %419 = vst [vmem:[%s417] sm:$0xf] %v418
                  %v420 = vld [vmem:[%s416 + $0x4] sm:$0xf]
                  %421 = vst [vmem:[%s417 + $0x4] sm:$0xf] %v420
                  %v422 = vld [vmem:[%s416 + $0x18] sm:$0xf]
                  %423 = vst [vmem:[%s417 + $0x8] sm:$0xf] %v422
                  %v424 = vld [vmem:[%s416 + $0x1c] sm:$0xf]
                  %425 = vst [vmem:[%s417 + $0xc] sm:$0xf] %v424
                $region124: #{tpu_custom_call.1} parent=111 // loop_footer
                  %s415 = sadd.s32 1, %s411
                $region125: #{tpu_custom_call.1} parent=111 // loop_footer_branch
                  %410 = sbr.rel target = $region121
                $region126: #{tpu_custom_call.1} parent=111 // loop_exit
                  _
              $region112: #{tpu_custom_call.1} parent=96 // pred_fallthru
                _
            $region97: #{tpu_custom_call.1} parent=92 // pred_fallthru
              _
            // Predicated region
            $region98: #{tpu_custom_call.1} parent=92 // pred_check
              _
            $region99: #{tpu_custom_call.1} parent=92 // pred_check_branch
              %381 = sbr.rel (0) target = $region101
            $region100: #{tpu_custom_call.1} parent=92 // pred_region
              loop: start=0, step=1, limit=1
              $region102: #{tpu_custom_call.1} parent=100 // loop_pre_header
                _
              $region103: #{tpu_custom_call.1} parent=100 // loop_header
                %s384 = sphi 0, %s388
                %p385 = scmp.ge.s32.totalorder %s384, 1
                %s389 = sphi %s375, %s375
                %s390 = sphi %s369, %s369
              $region104: #{tpu_custom_call.1} parent=100 // loop_header_branch
                %387 = sbr.rel (%p385) target = $region108
              $region105: #{tpu_custom_call.1} parent=100 // loop_body
                %v391 = vld [vmem:[%s389] sm:$0xf]
                %392 = vst [vmem:[%s390] sm:$0xf] %v391
                %v393 = vld [vmem:[%s389 + $0x4] sm:$0xf]
                %394 = vst [vmem:[%s390 + $0x4] sm:$0xf] %v393
                %v395 = vld [vmem:[%s389 + $0x18] sm:$0xf]
                %396 = vst [vmem:[%s390 + $0x8] sm:$0xf] %v395
                %v397 = vld [vmem:[%s389 + $0x1c] sm:$0xf]
                %398 = vst [vmem:[%s390 + $0xc] sm:$0xf] %v397
              $region106: #{tpu_custom_call.1} parent=100 // loop_footer
                %s388 = sadd.s32 1, %s384
              $region107: #{tpu_custom_call.1} parent=100 // loop_footer_branch
                %383 = sbr.rel target = $region103
              $region108: #{tpu_custom_call.1} parent=100 // loop_exit
                _
            $region101: #{tpu_custom_call.1} parent=92 // pred_fallthru
              _
          $region93: #{tpu_custom_call.1} parent=88 // pred_fallthru
            _
          %426 = vnop
        $region89: #{tpu_custom_call.1} parent=43 // pred_fallthru
          _
      $region44: #{tpu_custom_call.1} parent=5 // pred_fallthru
        _
      %p427 = scmp.le.s32.totalorder 1, %s18
      %p428 = scmp.lt.s32.totalorder %s18, 4
      %p429 = pnand %p427, %p428
      %p430 = pneg %p429
      // Predicated region
      $region127: #{tpu_custom_call.1} parent=5 // pred_check
        _
      $region128: #{tpu_custom_call.1} parent=5 // pred_check_branch
        %432 = sbr.rel (%p429) target = $region130
      $region129: #{tpu_custom_call.1} parent=5 // pred_region
        %s433 = ssub.s32 %s18, 1
        %s434 = sand.u32 %s45, 1
        %s435 = sand.u32 %s45, 1
        %s436 = smul.addr %s435, 16
        %s437 = scalar_lea.vmem [#allocation5], %s436
        // Predicated region
        $region131: #{tpu_custom_call.1} parent=129 // pred_check
          %p438 = pneg %p58
        $region132: #{tpu_custom_call.1} parent=129 // pred_check_branch
          %440 = sbr.rel (%p438) target = $region134
        $region133: #{tpu_custom_call.1} parent=129 // pred_region
          _
        $region134: #{tpu_custom_call.1} parent=129 // pred_fallthru
          _
        %s441 = sand.u32 %s73, 1
        %s442 = sand.u32 %s73, 1
        %s443 = smul.addr %s442, 16
        %s444 = scalar_lea.vmem [#allocation6], %s443
        // Predicated region
        $region135: #{tpu_custom_call.1} parent=129 // pred_check
          %p445 = pneg %p86
        $region136: #{tpu_custom_call.1} parent=129 // pred_check_branch
          %447 = sbr.rel (%p445) target = $region138
        $region137: #{tpu_custom_call.1} parent=129 // pred_region
          _
        $region138: #{tpu_custom_call.1} parent=129 // pred_fallthru
          _
        %s448 = sand.u32 %s45, 1
        %s449 = sand.u32 %s45, 1
        %s450 = smul.addr %s449, 16
        %s451 = scalar_lea.vmem [#allocation5], %s450
        %p452 = pneg %p58
        %p453 = pneg %p55
        %s454 = sand.u32 %s73, 1
        %s455 = sand.u32 %s73, 1
        %s456 = smul.addr %s455, 16
        %s457 = scalar_lea.vmem [#allocation6], %s456
        %p458 = pneg %p86
        %p459 = pneg %p83
        %p460 = pneg %p107
        %p461 = pneg %p104
        %p462 = pneg %p128
        %p463 = pneg %p125
        %p464 = pneg %p149
        %p465 = pneg %p146
        %p466 = pneg %p170
        %p467 = pneg %p167
        %p468 = pneg %p191
        %p469 = pneg %p188
        %p470 = pneg %p212
        %p471 = pneg %p209
        %p472 = pneg %p233
        %p473 = pneg %p230
        %p474 = pneg %p259
        %p475 = pneg %p256
        %s476 = smul.u32 2, %s27
        %s477 = smul.u32 2, %s28
        %s478 = smul.u32 2, %s27
        %s479 = smul.u32 2, %s28
        %p481 = scmp.eq.s32.totalorder %s28, 0
        // Predicated region
        $region139: #{tpu_custom_call.1} parent=129 // pred_check
          %p482 = pneg %p481
        $region140: #{tpu_custom_call.1} parent=129 // pred_check_branch
          %484 = sbr.rel (%p482) target = $region142
        $region141: #{tpu_custom_call.1} parent=129 // pred_region
          %vm485 = vcmask 254976
          %486 = vst.msk [vmem:[#allocation2] sm:$0x3] %vm485, 0.0
          %vm487 = vcmask 386048
          %488 = vst.msk [vmem:[#allocation3] sm:$0x3] %vm487, 0.0
        $region142: #{tpu_custom_call.1} parent=129 // pred_fallthru
          _
        %v489 = vld [vmem:[#allocation2] sm:$0x3]
        %v490 = vld [vmem:[%s437] sm:$0xf]
        %v491 = vld [vmem:[%s437 + $0x4] sm:$0xf]
        %v492 = vld [vmem:[%s437 + $0x8] sm:$0xf]
        %v493 = vld [vmem:[%s437 + $0xc] sm:$0xf]
        %v494 = vunpack.c.l.bf16 %v490
        %v495 = vunpack.c.l.bf16 %v491
        %v496 = vunpack.c.l.bf16 %v492
        %v497 = vunpack.c.l.bf16 %v493
        %vm498 = vcmask 261120
        %v499 = vsel %vm498, %v494, 0.0
        %v500 = vsel %vm498, %v495, 0.0
        %v501 = vadd.f32 %v499, %v500
        %v502 = vrot.slane %v501, 4
        %v503 = vadd.f32 %v501, %v502
        %v504 = vrot.slane %v503, 2
        %v505 = vadd.f32 %v503, %v504
        %v506 = vrot.slane %v505, 1
        %v507 = vadd.f32 %v505, %v506
        %v508 = vsel %vm498, %v496, 0.0
        %v509 = vsel %vm498, %v497, 0.0
        %v510 = vadd.f32 %v508, %v509
        %v511 = vrot.slane %v510, 4
        %v512 = vadd.f32 %v510, %v511
        %v513 = vrot.slane %v512, 2
        %v514 = vadd.f32 %v512, %v513
        %v515 = vrot.slane %v514, 1
        %v516 = vadd.f32 %v514, %v515
        %vm519 = vcmask 1041409
        %v520 = vsel %vm519, %v516, %v507
        %v522 = vadd.f32 %v489, %v520
        %vm523 = vcmask 254976
        %524 = vst.msk [vmem:[#allocation2] sm:$0x3] %vm523, %v522
        %v525 = vld [vmem:[#allocation3] sm:$0x3]
        %v526 = vld [vmem:[%s444] sm:$0xf]
        %v527 = vld [vmem:[%s444 + $0x4] sm:$0xf]
        %v528 = vld [vmem:[%s444 + $0x8] sm:$0xf]
        %v529 = vld [vmem:[%s444 + $0xc] sm:$0xf]
        %v530 = vunpack.c.l.bf16 %v526
        %v531 = vunpack.c.l.bf16 %v527
        %v532 = vunpack.c.l.bf16 %v528
        %v533 = vunpack.c.l.bf16 %v529
        %vm534 = vcmask 392192
        %v535 = vsel %vm534, %v530, 0.0
        %v536 = vsel %vm534, %v531, 0.0
        %v537 = vadd.f32 %v535, %v536
        %v538 = vrot.slane %v537, 4
        %v539 = vadd.f32 %v537, %v538
        %v540 = vrot.slane %v539, 2
        %v541 = vadd.f32 %v539, %v540
        %v542 = vrot.slane %v541, 1
        %v543 = vadd.f32 %v541, %v542
        %v544 = vsel %vm534, %v532, 0.0
        %v545 = vsel %vm534, %v533, 0.0
        %v546 = vadd.f32 %v544, %v545
        %v547 = vrot.slane %v546, 4
        %v548 = vadd.f32 %v546, %v547
        %v549 = vrot.slane %v548, 2
        %v550 = vadd.f32 %v548, %v549
        %v551 = vrot.slane %v550, 1
        %v552 = vadd.f32 %v550, %v551
        %v555 = vsel %vm519, %v552, %v543
        %v557 = vadd.f32 %v525, %v555
        %vm558 = vcmask 386048
        %559 = vst.msk [vmem:[#allocation3] sm:$0x3] %vm558, %v557
        %p560 = scmp.eq.s32.totalorder %s28, 2
        // Predicated region
        $region143: #{tpu_custom_call.1} parent=129 // pred_check
          %p561 = pneg %p560
        $region144: #{tpu_custom_call.1} parent=129 // pred_check_branch
          %563 = sbr.rel (%p561) target = $region146
        $region145: #{tpu_custom_call.1} parent=129 // pred_region
          %v564 = vld [vmem:[#allocation2] sm:$0x3]
          %v565 = vmul.f32 %v564, 0.041666668
          %v566 = vpack.c.bf16 %v565, %v565
          %v567 = vld [vmem:[#allocation3] sm:$0x3]
          %v568 = vmul.f32 %v567, 0.025
          %v569 = vpack.c.bf16 %v568, %v568
          %v570 = vld [vmem:[%s2] sm:$0xf]
          %v571 = vld [vmem:[%s2 + $0x4] sm:$0xf]
          %v572 = vld [vmem:[%s2 + $0x8] sm:$0xf]
          %v573 = vld [vmem:[%s2 + $0xc] sm:$0xf]
          %v574 = vld [vmem:[%s3] sm:$0xf]
          %v575 = vld [vmem:[%s3 + $0x4] sm:$0xf]
          %v576 = vld [vmem:[%s3 + $0x8] sm:$0xf]
          %v577 = vld [vmem:[%s3 + $0xc] sm:$0xf]
          %v578 = vld [vmem:[%s3 + $0x10] sm:$0xf]
          %v579 = vld [vmem:[%s3 + $0x14] sm:$0xf]
          %v586 = vunpack.c.l.b16 %v574
          %v587 = vunpack.c.l.b16 %v575
          %v588 = vunpack.c.l.b16 %v576
          %v589 = vunpack.c.l.b16 %v577
          %v590 = vunpack.c.l.b16 %v578
          %v591 = vunpack.c.l.b16 %v579
          %v592 = vpack.c.b16 %v587, %v586
          %v593 = vpack.c.b16 %v589, %v588
          %v594 = vpack.c.b16 %v591, %v590
          %v599 = vsel %vm534, %v569, 0
          %601 = vmatprep.subr.bf16.mxu0 0
          %602 = vmatpush1.bf16.msra.mxu0 %v592
          %603 = vmatprep.subr.bf16.mxu0 0
          %604 = vmatpush1.bf16.msra.mxu0 %v593
          %605 = vmatprep.subr.bf16.mxu0 0
          %606 = vmatpush1.bf16.msra.mxu0 %v594
          %607 = vmatprep.subr.bf16.mxu0 0
          %608 = vmatpush1.bf16.msra.mxu0 0
          %609 = vmatprep.subr.bf16.mxu0 0
          %610 = vmatpush1.bf16.msra.mxu0 0
          %611 = vmatprep.subr.bf16.mxu0 0
          %612 = vmatpush1.bf16.msra.mxu0 0
          %613 = vmatprep.subr.bf16.mxu0 0
          %614 = vmatpush1.bf16.msra.mxu0 0
          %615 = vmatprep.subr.bf16.mxu0 0
          %616 = vmatpush1.bf16.msra.mxu0 0
          %617 = vmatprep.subr.bf16.mxu0 0
          %618 = vmatpush1.bf16.msra.mxu0 0
          %619 = vmatprep.subr.bf16.mxu0 0
          %620 = vmatpush1.bf16.msra.mxu0 0
          %621 = vmatprep.subr.bf16.mxu0 0
          %622 = vmatpush1.bf16.msra.mxu0 0
          %623 = vmatprep.subr.bf16.mxu0 0
          %624 = vmatpush1.bf16.msra.mxu0 0
          %625 = vmatprep.subr.bf16.mxu0 0
          %626 = vmatpush1.bf16.msra.mxu0 0
          %627 = vmatprep.subr.bf16.mxu0 0
          %628 = vmatpush1.bf16.msra.mxu0 0
          %629 = vmatprep.subr.bf16.mxu0 0
          %630 = vmatpush1.bf16.msra.mxu0 0
          %631 = vmatprep.subr.bf16.mxu0 0
          %632 = vmatpush1.bf16.msra.mxu0 0
          %633 = vmatprep.mubr.bf16.mxu0 0
          %634 = vmatmul.mubr.bf16.gmra.mrb[0].mxu0 %v599
          %v635 = vpop.f32.mrb[0].mxu0
          %v636 = vadd.f32 0.0, %v635
          %v637 = vpop.f32.mrb[0].mxu0
          %v638 = vpop.f32.mrb[0].mxu0
          %v639 = vpop.f32.mrb[0].mxu0
          %640 = vdwg.mxu0
          %v645 = vunpack.c.l.b16 %v570
          %v646 = vunpack.c.l.b16 %v571
          %v647 = vunpack.c.l.b16 %v572
          %v648 = vunpack.c.l.b16 %v573
          %v649 = vpack.c.b16 %v646, %v645
          %v650 = vpack.c.b16 %v648, %v647
          %v654 = vsel %vm498, %v566, 0
          %656 = vmatprep.subr.bf16.mxu0 0
          %657 = vmatpush1.bf16.msra.mxu0 %v649
          %658 = vmatprep.subr.bf16.mxu0 0
          %659 = vmatpush1.bf16.msra.mxu0 %v650
          %660 = vmatprep.subr.bf16.mxu0 0
          %661 = vmatpush1.bf16.msra.mxu0 0
          %662 = vmatprep.subr.bf16.mxu0 0
          %663 = vmatpush1.bf16.msra.mxu0 0
          %664 = vmatprep.subr.bf16.mxu0 0
          %665 = vmatpush1.bf16.msra.mxu0 0
          %666 = vmatprep.subr.bf16.mxu0 0
          %667 = vmatpush1.bf16.msra.mxu0 0
          %668 = vmatprep.subr.bf16.mxu0 0
          %669 = vmatpush1.bf16.msra.mxu0 0
          %670 = vmatprep.subr.bf16.mxu0 0
          %671 = vmatpush1.bf16.msra.mxu0 0
          %672 = vmatprep.subr.bf16.mxu0 0
          %673 = vmatpush1.bf16.msra.mxu0 0
          %674 = vmatprep.subr.bf16.mxu0 0
          %675 = vmatpush1.bf16.msra.mxu0 0
          %676 = vmatprep.subr.bf16.mxu0 0
          %677 = vmatpush1.bf16.msra.mxu0 0
          %678 = vmatprep.subr.bf16.mxu0 0
          %679 = vmatpush1.bf16.msra.mxu0 0
          %680 = vmatprep.subr.bf16.mxu0 0
          %681 = vmatpush1.bf16.msra.mxu0 0
          %682 = vmatprep.subr.bf16.mxu0 0
          %683 = vmatpush1.bf16.msra.mxu0 0
          %684 = vmatprep.subr.bf16.mxu0 0
          %685 = vmatpush1.bf16.msra.mxu0 0
          %686 = vmatprep.subr.bf16.mxu0 0
          %687 = vmatpush1.bf16.msra.mxu0 0
          %688 = vmatprep.mubr.bf16.mxu0 0
          %689 = vmatmul.mubr.bf16.gmra.mrb[0].mxu0 %v654
          %v690 = vpop.f32.mrb[0].mxu0
          %v691 = vadd.f32 %v636, %v690
          %v692 = vpop.f32.mrb[0].mxu0
          %v693 = vpop.f32.mrb[0].mxu0
          %v694 = vpop.f32.mrb[0].mxu0
          %695 = vdwg.mxu0
          %v696 = vld [vmem:[%s4] sm:$0x1]
          %v698 = vlaneseq
          %v699 = vshrl.u32 %v698, 7
          %v700 = vsub.s32 0, %v699
          %v701 = vrot.slane %v696, %v700
          %v703 = vadd.f32 %v691, %v701
          %v704 = vmax.f32 %v703, 0.0
          %v705 = vpack.c.bf16 %v704, %v704
          %v706 = vld [vmem:[%s5] sm:$0xf]
          %v707 = vld [vmem:[%s5 + $0x4] sm:$0xf]
          %v708 = vld [vmem:[%s5 + $0x8] sm:$0xf]
          %v709 = vld [vmem:[%s5 + $0xc] sm:$0xf]
          %v710 = vld [vmem:[%s6] sm:$0x1]
          %v712 = vlaneseq
          %v713 = vshrl.u32 %v712, 7
          %v714 = vsub.s32 0, %v713
          %v715 = vrot.slane %v710, %v714
          %v721 = vunpack.c.l.b16 %v706
          %v722 = vunpack.c.l.b16 %v707
          %v723 = vunpack.c.l.b16 %v708
          %v724 = vunpack.c.l.b16 %v709
          %v725 = vpack.c.b16 %v722, %v721
          %v726 = vpack.c.b16 %v724, %v723
          %v730 = vsel %vm498, %v705, 0
          %732 = vmatprep.subr.bf16.mxu0 0
          %733 = vmatpush1.bf16.msra.mxu0 %v725
          %734 = vmatprep.subr.bf16.mxu0 0
          %735 = vmatpush1.bf16.msra.mxu0 %v726
          %736 = vmatprep.subr.bf16.mxu0 0
          %737 = vmatpush1.bf16.msra.mxu0 0
          %738 = vmatprep.subr.bf16.mxu0 0
          %739 = vmatpush1.bf16.msra.mxu0 0
          %740 = vmatprep.subr.bf16.mxu0 0
          %741 = vmatpush1.bf16.msra.mxu0 0
          %742 = vmatprep.subr.bf16.mxu0 0
          %743 = vmatpush1.bf16.msra.mxu0 0
          %744 = vmatprep.subr.bf16.mxu0 0
          %745 = vmatpush1.bf16.msra.mxu0 0
          %746 = vmatprep.subr.bf16.mxu0 0
          %747 = vmatpush1.bf16.msra.mxu0 0
          %748 = vmatprep.subr.bf16.mxu0 0
          %749 = vmatpush1.bf16.msra.mxu0 0
          %750 = vmatprep.subr.bf16.mxu0 0
          %751 = vmatpush1.bf16.msra.mxu0 0
          %752 = vmatprep.subr.bf16.mxu0 0
          %753 = vmatpush1.bf16.msra.mxu0 0
          %754 = vmatprep.subr.bf16.mxu0 0
          %755 = vmatpush1.bf16.msra.mxu0 0
          %756 = vmatprep.subr.bf16.mxu0 0
          %757 = vmatpush1.bf16.msra.mxu0 0
          %758 = vmatprep.subr.bf16.mxu0 0
          %759 = vmatpush1.bf16.msra.mxu0 0
          %760 = vmatprep.subr.bf16.mxu0 0
          %761 = vmatpush1.bf16.msra.mxu0 0
          %762 = vmatprep.subr.bf16.mxu0 0
          %763 = vmatpush1.bf16.msra.mxu0 0
          %764 = vmatprep.mubr.bf16.mxu0 0
          %765 = vmatmul.mubr.bf16.gmra.mrb[0].mxu0 %v730
          %v766 = vpop.f32.mrb[0].mxu0
          %v767 = vadd.f32 %v715, %v766
          %v768 = vpop.f32.mrb[0].mxu0
          %v769 = vpop.f32.mrb[0].mxu0
          %v770 = vpop.f32.mrb[0].mxu0
          %771 = vdwg.mxu0
          %v772 = vmax.f32 %v767, 0.0
          %v773 = vld [vmem:[%s7] sm:$0x1]
          %v775 = vlaneseq
          %v776 = vshrl.u32 %v775, 7
          %v777 = vsub.s32 0, %v776
          %v778 = vrot.slane %v773, %v777
          %v780 = vmul.f32 %v772, %v778
          %vm781 = vcmask 123904
          %v782 = vsel %vm781, %v780, 0.0
          %783 = vadd.xlane.f32.xlu0 %v782
          %v784 = vpop.xlane.xlu0 %783
          %v785 = vld [vmem:[#allocation4] sm:$0x1]
          %v787 = vlaneseq
          %v788 = vshrl.u32 %v787, 7
          %v789 = vsub.s32 0, %v788
          %v790 = vrot.slane %v785, %v789
          %v792 = vadd.f32 %v784, %v790
          %v793 = vxor.u32 %v792, 2147483648
          %v794 = vmul.f32 %v793, 1.442695
          %v795 = vpow.pop %v794
          %v796 = vadd.f32 %v795, 1.0
          %v797 = vrcp.pop %v796
          %v798 = vmul.f32 1.0, %v797
          %800 = vset.pattern.permute.xlu0 0
          %801 = vperm.xlu0 %800, %v798
          %v802 = vpop.permute.xlu0 %801
          %804 = vst [vmem:[#allocation7] sm:$0x3] %v802
        $region146: #{tpu_custom_call.1} parent=129 // pred_fallthru
          _
        // Predicated region
        $region147: #{tpu_custom_call.1} parent=129 // pred_check
          %p805 = pneg %p256
        $region148: #{tpu_custom_call.1} parent=129 // pred_check_branch
          %807 = sbr.rel (%p805) target = $region150
        $region149: #{tpu_custom_call.1} parent=129 // pred_region
          %s809 = ssub.s32 32, 32
          %810 = vsyncadd [#allocation8], %s809
          %s811 = smul.addr %s27, 32
          %s812 = scalar_lea.hbm %s9, %s811
          %s814 = sshll.u32 [#allocation7], 4
          %s815 = int_to_ptr.vmem [resolvable:$true] %s814
          %817 = dma.vmem_to_hbm [thread:$0]  %s815, 32, %s812, [#allocation8]
        $region150: #{tpu_custom_call.1} parent=129 // pred_fallthru
          _
        // Predicated region
        $region151: #{tpu_custom_call.1} parent=129 // pred_check
          %p818 = pneg %p256
        $region152: #{tpu_custom_call.1} parent=129 // pred_check_branch
          %820 = sbr.rel (%p818) target = $region154
        $region153: #{tpu_custom_call.1} parent=129 // pred_region
          %821 = dma.done [#allocation8], 32
        $region154: #{tpu_custom_call.1} parent=129 // pred_fallthru
          _
      $region130: #{tpu_custom_call.1} parent=5 // pred_fallthru
        _
      %p822 = scmp.le.s32.totalorder 2, %s18
      // Predicated region
      $region155: #{tpu_custom_call.1} parent=5 // pred_check
        %p823 = pneg %p822
      $region156: #{tpu_custom_call.1} parent=5 // pred_check_branch
        %825 = sbr.rel (%p823) target = $region158
      $region157: #{tpu_custom_call.1} parent=5 // pred_region
        %s826 = ssub.s32 %s18, 2
      $region158: #{tpu_custom_call.1} parent=5 // pred_fallthru
        _
    $region6: #{tpu_custom_call.1} parent=1 // loop_footer
      %s22 = sadd.s32 1, %s18
    $region7: #{tpu_custom_call.1} parent=1 // loop_footer_branch
      %17 = sbr.rel target = $region3
    $region8: #{tpu_custom_call.1} parent=1 // loop_exit
      _
    %827 = vsyncpa [#allocation8], 1
    %s828 = scalar_lea.sflag [#allocation8], 1
    %829 = vsyncpa %s828, 1

</llo_original>
